<compile_context>
chip_gen: v5e
topology: v5e:2x2
jax: 0.10.0
libtpu: 0.0.40
codegen_flags: <defaults>
</compile_context>

<pallas_src>
import functools

import jax
import jax.numpy as jnp
from jax.experimental import pallas as pl
from jax.experimental.pallas import tpu as pltpu

_SUBLANE = 8
_SINGLE_BUFFER_WEIGHTS_OK = True  # flipped off if pl.Buffered(1) is unsupported


def _round_up(n, m):
    return ((n + m - 1) // m) * m


def _physical_vmem_bytes():
    try:
        return int(pltpu.get_tpu_info().vmem_capacity_bytes)
    except Exception:
        return 64 << 20  # conservative (v7x-sized) fallback


def _vmem_step_bytes(tm, H, A, itemsize, fuse_residual, weight_buffers=2):
    # Per-grid-step VMEM footprint estimate (pipeline double-buffers I/O tiles).
    io_tiles = 2 + (1 if fuse_residual else 0)           # x, out, (residual)
    tiles = io_tiles * tm * H * itemsize * 2
    weights = 2 * H * A * itemsize * weight_buffers      # W_down + W_up
    temps = tm * H * 4 + 4 * tm * A * 4                  # f32 epilogue temporaries
    return tiles + weights + temps


def _pick_tm(T, H, A, itemsize, fuse_residual, phys_vmem):
    # v7x has 64 MiB VMEM per TensorCore -> cap near 512; v5e/v6e (128 MiB)
    # can take 1024-wide token tiles (the kernel is HBM-bound; bigger tiles
    # amortize the ~0.35us/step overhead and small-DMA inefficiency).
    cap = 1024 if phys_vmem >= (96 << 20) else 512
    budget = int(phys_vmem * 0.8)        # headroom for compiler scratch
    t_ceil = _round_up(max(T, _SUBLANE), _SUBLANE)
    tm = _SUBLANE
    for cand in (1024, 512, 256, 128, 64, 32, 16, 8):
        if cand > cap or cand > t_ceil:
            continue
        if _vmem_step_bytes(cand, H, A, itemsize, fuse_residual, 2) <= budget:
            tm = cand
            break
    # Keep >=8 grid steps when the batch allows so each TensorCore (2 on v7x)
    # gets multiple pipelined iterations (DMA/compute overlap needs >1/core).
    while tm > 128 and pl.cdiv(T, tm) < 8:
        tm //= 2
    return tm


def _erf_f32(x):
    # Abramowitz & Stegun 7.1.26 polynomial (|err| < 1.5e-7); matches
    # nn.GELU()'s exact-erf semantics well below bf16 precision.
    p = jnp.float32(0.3275911)
    a1 = jnp.float32(0.254829592)
    a2 = jnp.float32(-0.284496736)
    a3 = jnp.float32(1.421413741)
    a4 = jnp.float32(-1.453152027)
    a5 = jnp.float32(1.061405429)
    s = jnp.where(x >= 0, jnp.float32(1.0), jnp.float32(-1.0))
    ax = jnp.abs(x)
    # EUP reciprocal (free slot on v5e's weak VPU) instead of a VALU divide.
    t = pl.reciprocal(jnp.float32(1.0) + p * ax, approx=True)
    poly = ((((a5 * t + a4) * t + a3) * t + a2) * t + a1) * t
    return s * (1.0 - poly * jnp.exp(-ax * ax))


def _gelu_exact_f32(x):
    return jnp.float32(0.5) * x * (1.0 + _erf_f32(x * jnp.float32(0.7071067811865476)))


def _adapter_mlp_kernel(x_ref, wd_ref, wu_ref, *rest, scaling, fuse_residual):
    # x_ref: [tm, H], wd_ref: [H, A], wu_ref: [A, H], (res_ref: [tm, H]), o_ref: [tm, H]
    if fuse_residual:
        res_ref, o_ref = rest
    else:
        (o_ref,) = rest
    h = jnp.dot(x_ref[...], wd_ref[...], preferred_element_type=jnp.float32)
    h = _gelu_exact_f32(h)                                  # f32 epilogue
    # Intentional f32 -> bf16 cast of the activation before the up-projection
    # (matches the bf16 torch serving path; feeds the MXU at full rate).
    out = jnp.dot(h.astype(wu_ref.dtype), wu_ref[...],
                  preferred_element_type=jnp.float32)
    out = out * jnp.float32(scaling)
    if fuse_residual:
        out = out + res_ref[...].astype(jnp.float32)
    o_ref[...] = out.astype(o_ref.dtype)


def parallel_adapter_mlp(x, w_down, w_up, adapter_scaling, residual=None, *, tm=None):
    """x: [..., H]; w_down: [H, A]; w_up: [A, H]; residual (optional): [..., H].

    Returns GELU(x @ w_down) @ w_up * adapter_scaling (+ residual if given).
    """
    global _SINGLE_BUFFER_WEIGHTS_OK

    orig_shape = x.shape
    H = orig_shape[-1]
    Hd, A = w_down.shape
    Au, Hu = w_up.shape
    assert H == Hd and A == Au and H == Hu, (x.shape, w_down.shape, w_up.shape)

    x2 = x.reshape(-1, H)
    T = x2.shape[0]
    fuse_residual = residual is not None
    if fuse_residual:
        res2 = residual.reshape(-1, H)
        assert res2.shape == (T, H)

    itemsize = jnp.dtype(x.dtype).itemsize
    phys_vmem = _physical_vmem_bytes()
    if tm is None:
        tm = _pick_tm(T, H, A, itemsize, fuse_residual, phys_vmem)
    tm = _round_up(max(_SUBLANE, min(tm, _round_up(T, _SUBLANE))), _SUBLANE)

    # Ragged token counts: pad to a tile multiple, slice the result back.
    T_pad = _round_up(T, tm)
    x_p = x2 if T_pad == T else jnp.pad(x2, ((0, T_pad - T), (0, 0)))
    operands = [x_p, w_down, w_up]
    io_aliases = {}
    if fuse_residual:
        res_p = res2 if T_pad == T else jnp.pad(res2, ((0, T_pad - T), (0, 0)))
        operands.append(res_p)
        io_aliases = {3: 0}          # residual input buffer is reused as the output

    grid = (T_pad // tm,)

    est = _vmem_step_bytes(tm, H, A, itemsize, fuse_residual, 2)
    vmem_limit = int(min(phys_vmem - (2 << 20), max(est + (16 << 20), 64 << 20)))

    cost = pl.CostEstimate(
        flops=4 * T * H * A,                                   # two matmuls
        transcendentals=T * A,                                 # one exp / GELU element
        bytes_accessed=(T * H * itemsize) * (3 if fuse_residual else 2)
        + 2 * H * A * jnp.dtype(w_down.dtype).itemsize,
    )

    tile_spec = pl.BlockSpec((tm, H), lambda i: (i, 0))

    def _weight_spec(shape, single_buffer):
        if single_buffer:
            # Constant index_map -> one resident buffer is enough; frees VMEM.
            return pl.BlockSpec(shape, lambda i: (0, 0), pipeline_mode=pl.Buffered(1))
        return pl.BlockSpec(shape, lambda i: (0, 0))

    def _run(single_buffer_weights):
        in_specs = [tile_spec,
                    _weight_spec((H, A), single_buffer_weights),
                    _weight_spec((A, H), single_buffer_weights)]
        if fuse_residual:
            in_specs.append(pl.BlockSpec((tm, H), lambda i: (i, 0)))
        return pl.pallas_call(
            functools.partial(_adapter_mlp_kernel,
                              scaling=float(adapter_scaling),
                              fuse_residual=fuse_residual),
            grid=grid,
            in_specs=in_specs,
            out_specs=pl.BlockSpec((tm, H), lambda i: (i, 0)),
            out_shape=jax.ShapeDtypeStruct((T_pad, H), x.dtype),
            input_output_aliases=io_aliases,
            compiler_params=pltpu.CompilerParams(
                dimension_semantics=("parallel",),
                vmem_limit_bytes=vmem_limit,
            ),
            cost_estimate=cost,
        )(*operands)

    if _SINGLE_BUFFER_WEIGHTS_OK:
        try:
            out = _run(True)
        except Exception:
            _SINGLE_BUFFER_WEIGHTS_OK = False
            out = _run(False)
    else:
        out = _run(False)

    if T_pad != T:
        out = out[:T]
    return out.reshape(orig_shape)


def _reference(x, w_down, w_up, adapter_scaling):
    h = jnp.dot(x.astype(jnp.float32), w_down.astype(jnp.float32))
    h = jax.nn.gelu(h, approximate=False)
    out = jnp.dot(h, w_up.astype(jnp.float32))
    return out * adapter_scaling


if __name__ == "__main__":
    # Small shapes; T is intentionally ragged (not a tile multiple) to exercise
    # the cdiv/padding path the perf review asked for.
    T = 500                 # tokens (batch * seq flattened, as vLLM does)
    HIDDEN = 256            # config.hidden_size (multiple of 128 -> lane-dense)
    ADAPTER_DIM = 64        # adapter_dim
    ADAPTER_SCALING = 0.5   # adapter_scaling

    key = jax.random.PRNGKey(0)
    kx, kd, ku, kr = jax.random.split(key, 4)
    x = jax.random.normal(kx, (T, HIDDEN), dtype=jnp.float32).astype(jnp.bfloat16)
    w_down = (jax.random.normal(kd, (HIDDEN, ADAPTER_DIM), dtype=jnp.float32)
              * 0.05).astype(jnp.bfloat16)
    w_up = (jax.random.normal(ku, (ADAPTER_DIM, HIDDEN), dtype=jnp.float32)
            * 0.05).astype(jnp.bfloat16)
    base = jax.random.normal(kr, (T, HIDDEN), dtype=jnp.float32).astype(jnp.bfloat16)

    ref_adapter = _reference(x, w_down, w_up, ADAPTER_SCALING)
    ref_fused = ref_adapter + base.astype(jnp.float32)

    # Plain adapter output (matches the PyTorch module's forward).
    out = jax.block_until_ready(parallel_adapter_mlp(x, w_down, w_up, ADAPTER_SCALING))
    # Fused residual-add variant (adapter output + base, written in place).
    out_fused = jax.block_until_ready(
        parallel_adapter_mlp(x, w_down, w_up, ADAPTER_SCALING, residual=base))

    assert out.shape == (T, HIDDEN), out.shape
    assert out_fused.shape == (T, HIDDEN), out_fused.shape
    assert bool(jnp.all(jnp.isfinite(out.astype(jnp.float32))))
    assert bool(jnp.all(jnp.isfinite(out_fused.astype(jnp.float32))))
    err = float(jnp.max(jnp.abs(out.astype(jnp.float32) - ref_adapter)))
    err_f = float(jnp.max(jnp.abs(out_fused.astype(jnp.float32) - ref_fused)))
    assert err < 5e-2, f"max abs error {err}"
    assert err_f < 6e-2, f"max abs error (fused residual) {err_f}"
    print("KERNEL_OK")
</pallas_src>

<mosaic_0001>
module attributes {stable_mosaic.version = 11 : i64} {
  func.func @_adapter_mlp_kernel(%arg0: i32, %arg1: memref<128x256xbf16, #tpu.memory_space<vmem>>, %arg2: memref<256x64xbf16, #tpu.memory_space<vmem>>, %arg3: memref<64x256xbf16, #tpu.memory_space<vmem>>, %arg4: memref<128x256xbf16, #tpu.memory_space<vmem>>) attributes {dimension_semantics = [#tpu.dimension_semantics<parallel>], iteration_bounds = array<i64: 4>, scalar_prefetch = 0 : i64, scratch_operands = 0 : i64, tpu.core_type = #tpu.core_type<tc>, window_params = [{transform_indices = @transform_0, window_bounds = array<i64: 128, 256>}, {pipeline_mode = #tpu.pipeline_mode<synchronous>, transform_indices = @transform_1, window_bounds = array<i64: 256, 64>}, {pipeline_mode = #tpu.pipeline_mode<synchronous>, transform_indices = @transform_2, window_bounds = array<i64: 64, 256>}, {transform_indices = @transform_3, window_bounds = array<i64: 128, 256>}]} {
    %c0 = arith.constant 0 : index
    %c0_0 = arith.constant 0 : index
    %0 = vector.load %arg1[%c0, %c0_0] : memref<128x256xbf16, #tpu.memory_space<vmem>>, vector<128x256xbf16>
    %c0_1 = arith.constant 0 : index
    %c0_2 = arith.constant 0 : index
    %1 = vector.load %arg2[%c0_1, %c0_2] : memref<256x64xbf16, #tpu.memory_space<vmem>>, vector<256x64xbf16>
    %cst = arith.constant dense<0.000000e+00> : vector<128x64xf32>
    %2 = tpu.matmul %0, %1, %cst {dimension_numbers = #tpu.dot_dimension_numbers<[1], [0], [0], [1], [0, 0, 1, 1], [], []>} : vector<128x256xbf16>, vector<256x64xbf16>, vector<128x64xf32> -> vector<128x64xf32>
    %cst_3 = arith.constant 5.000000e-01 : f32
    %3 = vector.broadcast %cst_3 : f32 to vector<128x64xf32>
    %4 = arith.mulf %3, %2 : vector<128x64xf32>
    %cst_4 = arith.constant 0.707106769 : f32
    %5 = vector.broadcast %cst_4 : f32 to vector<128x64xf32>
    %6 = arith.mulf %2, %5 : vector<128x64xf32>
    %cst_5 = arith.constant 0.000000e+00 : f32
    %7 = vector.broadcast %cst_5 : f32 to vector<128x64xf32>
    %8 = arith.cmpf oge, %6, %7 : vector<128x64xf32>
    %cst_6 = arith.constant 1.000000e+00 : f32
    %cst_7 = arith.constant -1.000000e+00 : f32
    %9 = vector.broadcast %cst_6 : f32 to vector<128x64xf32>
    %10 = vector.broadcast %cst_7 : f32 to vector<128x64xf32>
    %11 = arith.select %8, %9, %10 : vector<128x64xi1>, vector<128x64xf32>
    %12 = math.absf %6 : vector<128x64xf32>
    %cst_8 = arith.constant 0.327591091 : f32
    %13 = vector.broadcast %cst_8 : f32 to vector<128x64xf32>
    %14 = arith.mulf %13, %12 : vector<128x64xf32>
    %cst_9 = arith.constant 1.000000e+00 : f32
    %15 = vector.broadcast %cst_9 : f32 to vector<128x64xf32>
    %16 = arith.addf %15, %14 : vector<128x64xf32>
    %17 = tpu.reciprocal %16 {approx = true} : vector<128x64xf32> -> vector<128x64xf32>
    %cst_10 = arith.constant 1.06140542 : f32
    %18 = vector.broadcast %cst_10 : f32 to vector<128x64xf32>
    %19 = arith.mulf %18, %17 : vector<128x64xf32>
    %cst_11 = arith.constant -1.45315206 : f32
    %20 = vector.broadcast %cst_11 : f32 to vector<128x64xf32>
    %21 = arith.addf %19, %20 : vector<128x64xf32>
    %22 = arith.mulf %21, %17 : vector<128x64xf32>
    %cst_12 = arith.constant 1.42141378 : f32
    %23 = vector.broadcast %cst_12 : f32 to vector<128x64xf32>
    %24 = arith.addf %22, %23 : vector<128x64xf32>
    %25 = arith.mulf %24, %17 : vector<128x64xf32>
    %cst_13 = arith.constant -0.284496725 : f32
    %26 = vector.broadcast %cst_13 : f32 to vector<128x64xf32>
    %27 = arith.addf %25, %26 : vector<128x64xf32>
    %28 = arith.mulf %27, %17 : vector<128x64xf32>
    %cst_14 = arith.constant 0.254829586 : f32
    %29 = vector.broadcast %cst_14 : f32 to vector<128x64xf32>
    %30 = arith.addf %28, %29 : vector<128x64xf32>
    %31 = arith.mulf %30, %17 : vector<128x64xf32>
    %cst_15 = arith.constant 0.000000e+00 : f32
    %32 = vector.broadcast %cst_15 : f32 to vector<128x64xf32>
    %33 = arith.subf %32, %12 : vector<128x64xf32>
    %34 = arith.mulf %33, %12 : vector<128x64xf32>
    %35 = math.exp %34 : vector<128x64xf32>
    %36 = arith.mulf %31, %35 : vector<128x64xf32>
    %cst_16 = arith.constant 1.000000e+00 : f32
    %37 = vector.broadcast %cst_16 : f32 to vector<128x64xf32>
    %38 = arith.subf %37, %36 : vector<128x64xf32>
    %39 = arith.mulf %11, %38 : vector<128x64xf32>
    %cst_17 = arith.constant 1.000000e+00 : f32
    %40 = vector.broadcast %cst_17 : f32 to vector<128x64xf32>
    %41 = arith.addf %40, %39 : vector<128x64xf32>
    %42 = arith.mulf %4, %41 : vector<128x64xf32>
    %43 = arith.truncf %42 : vector<128x64xf32> to vector<128x64xbf16>
    %c0_18 = arith.constant 0 : index
    %c0_19 = arith.constant 0 : index
    %44 = vector.load %arg3[%c0_18, %c0_19] : memref<64x256xbf16, #tpu.memory_space<vmem>>, vector<64x256xbf16>
    %cst_20 = arith.constant dense<0.000000e+00> : vector<128x256xf32>
    %45 = tpu.matmul %43, %44, %cst_20 {dimension_numbers = #tpu.dot_dimension_numbers<[1], [0], [0], [1], [0, 0, 1, 1], [], []>} : vector<128x64xbf16>, vector<64x256xbf16>, vector<128x256xf32> -> vector<128x256xf32>
    %cst_21 = arith.constant 5.000000e-01 : f32
    %46 = vector.broadcast %cst_21 : f32 to vector<128x256xf32>
    %47 = arith.mulf %45, %46 : vector<128x256xf32>
    %48 = arith.truncf %47 : vector<128x256xf32> to vector<128x256xbf16>
    %c0_22 = arith.constant 0 : index
    %c0_23 = arith.constant 0 : index
    %49 = vector.load %arg4[%c0_22, %c0_23] : memref<128x256xbf16, #tpu.memory_space<vmem>>, vector<128x256xbf16>
    tpu.vector_store %arg4[%c0_22, %c0_23], %48 {strides = array<i32>} : memref<128x256xbf16, #tpu.memory_space<vmem>>, vector<128x256xbf16>,
    return
  }
  func.func @transform_0(%arg0: i32) -> (i32, i32) {
    %c0_i32 = arith.constant 0 : i32
    %c0_i32_0 = arith.constant 0 : i32
    return %arg0, %c0_i32 : i32, i32
  }
  func.func @transform_1(%arg0: i32) -> (i32, i32) {
    %c0_i32 = arith.constant 0 : i32
    %c0_i32_0 = arith.constant 0 : i32
    %c0_i32_1 = arith.constant 0 : i32
    return %c0_i32, %c0_i32_0 : i32, i32
  }
  func.func @transform_2(%arg0: i32) -> (i32, i32) {
    %c0_i32 = arith.constant 0 : i32
    %c0_i32_0 = arith.constant 0 : i32
    %c0_i32_1 = arith.constant 0 : i32
    return %c0_i32, %c0_i32_0 : i32, i32
  }
  func.func @transform_3(%arg0: i32) -> (i32, i32) {
    %c0_i32 = arith.constant 0 : i32
    %c0_i32_0 = arith.constant 0 : i32
    return %arg0, %c0_i32 : i32, i32
  }
}

module attributes {stable_mosaic.version = 11 : i64} {
  func.func @_adapter_mlp_kernel(%arg0: i32, %arg1: memref<128x256xbf16, #tpu.memory_space<vmem>>, %arg2: memref<256x64xbf16, #tpu.memory_space<vmem>>, %arg3: memref<64x256xbf16, #tpu.memory_space<vmem>>, %arg4: memref<128x256xbf16, #tpu.memory_space<vmem>>) attributes {dimension_semantics = [#tpu.dimension_semantics<parallel>], iteration_bounds = array<i64: 4>, scalar_prefetch = 0 : i64, scratch_operands = 0 : i64, tpu.core_type = #tpu.core_type<tc>, window_params = [{transform_indices = @transform_0, window_bounds = array<i64: 128, 256>}, {pipeline_mode = #tpu.pipeline_mode<synchronous>, transform_indices = @transform_1, window_bounds = array<i64: 256, 64>}, {pipeline_mode = #tpu.pipeline_mode<synchronous>, transform_indices = @transform_2, window_bounds = array<i64: 64, 256>}, {transform_indices = @transform_3, window_bounds = array<i64: 128, 256>}]} {
    %c0 = arith.constant 0 : index
    %c0_0 = arith.constant 0 : index
    %0 = vector.load %arg1[%c0, %c0_0] : memref<128x256xbf16, #tpu.memory_space<vmem>>, vector<128x256xbf16>
    %c0_1 = arith.constant 0 : index
    %c0_2 = arith.constant 0 : index
    %1 = vector.load %arg2[%c0_1, %c0_2] : memref<256x64xbf16, #tpu.memory_space<vmem>>, vector<256x64xbf16>
    %cst = arith.constant dense<0.000000e+00> : vector<128x64xf32>
    %2 = tpu.matmul %0, %1, %cst {dimension_numbers = #tpu.dot_dimension_numbers<[1], [0], [0], [1], [0, 0, 1, 1], [], []>} : vector<128x256xbf16>, vector<256x64xbf16>, vector<128x64xf32> -> vector<128x64xf32>
    %cst_3 = arith.constant 5.000000e-01 : f32
    %3 = vector.broadcast %cst_3 : f32 to vector<128x64xf32>
    %4 = arith.mulf %3, %2 : vector<128x64xf32>
    %cst_4 = arith.constant 0.707106769 : f32
    %5 = vector.broadcast %cst_4 : f32 to vector<128x64xf32>
    %6 = arith.mulf %2, %5 : vector<128x64xf32>
    %cst_5 = arith.constant 0.000000e+00 : f32
    %7 = vector.broadcast %cst_5 : f32 to vector<128x64xf32>
    %8 = arith.cmpf oge, %6, %7 : vector<128x64xf32>
    %cst_6 = arith.constant 1.000000e+00 : f32
    %cst_7 = arith.constant -1.000000e+00 : f32
    %9 = vector.broadcast %cst_6 : f32 to vector<128x64xf32>
    %10 = vector.broadcast %cst_7 : f32 to vector<128x64xf32>
    %11 = arith.select %8, %9, %10 : vector<128x64xi1>, vector<128x64xf32>
    %12 = math.absf %6 : vector<128x64xf32>
    %cst_8 = arith.constant 0.327591091 : f32
    %13 = vector.broadcast %cst_8 : f32 to vector<128x64xf32>
    %14 = arith.mulf %13, %12 : vector<128x64xf32>
    %cst_9 = arith.constant 1.000000e+00 : f32
    %15 = vector.broadcast %cst_9 : f32 to vector<128x64xf32>
    %16 = arith.addf %15, %14 : vector<128x64xf32>
    %17 = tpu.reciprocal %16 {approx = true} : vector<128x64xf32> -> vector<128x64xf32>
    %cst_10 = arith.constant 1.06140542 : f32
    %18 = vector.broadcast %cst_10 : f32 to vector<128x64xf32>
    %19 = arith.mulf %18, %17 : vector<128x64xf32>
    %cst_11 = arith.constant -1.45315206 : f32
    %20 = vector.broadcast %cst_11 : f32 to vector<128x64xf32>
    %21 = arith.addf %19, %20 : vector<128x64xf32>
    %22 = arith.mulf %21, %17 : vector<128x64xf32>
    %cst_12 = arith.constant 1.42141378 : f32
    %23 = vector.broadcast %cst_12 : f32 to vector<128x64xf32>
    %24 = arith.addf %22, %23 : vector<128x64xf32>
    %25 = arith.mulf %24, %17 : vector<128x64xf32>
    %cst_13 = arith.constant -0.284496725 : f32
    %26 = vector.broadcast %cst_13 : f32 to vector<128x64xf32>
    %27 = arith.addf %25, %26 : vector<128x64xf32>
    %28 = arith.mulf %27, %17 : vector<128x64xf32>
    %cst_14 = arith.constant 0.254829586 : f32
    %29 = vector.broadcast %cst_14 : f32 to vector<128x64xf32>
    %30 = arith.addf %28, %29 : vector<128x64xf32>
    %31 = arith.mulf %30, %17 : vector<128x64xf32>
    %cst_15 = arith.constant 0.000000e+00 : f32
    %32 = vector.broadcast %cst_15 : f32 to vector<128x64xf32>
    %33 = arith.subf %32, %12 : vector<128x64xf32>
    %34 = arith.mulf %33, %12 : vector<128x64xf32>
    %35 = math.exp %34 : vector<128x64xf32>
    %36 = arith.mulf %31, %35 : vector<128x64xf32>
    %cst_16 = arith.constant 1.000000e+00 : f32
    %37 = vector.broadcast %cst_16 : f32 to vector<128x64xf32>
    %38 = arith.subf %37, %36 : vector<128x64xf32>
    %39 = arith.mulf %11, %38 : vector<128x64xf32>
    %cst_17 = arith.constant 1.000000e+00 : f32
    %40 = vector.broadcast %cst_17 : f32 to vector<128x64xf32>
    %41 = arith.addf %40, %39 : vector<128x64xf32>
    %42 = arith.mulf %4, %41 : vector<128x64xf32>
    %43 = arith.truncf %42 : vector<128x64xf32> to vector<128x64xbf16>
    %c0_18 = arith.constant 0 : index
    %c0_19 = arith.constant 0 : index
    %44 = vector.load %arg3[%c0_18, %c0_19] : memref<64x256xbf16, #tpu.memory_space<vmem>>, vector<64x256xbf16>
    %cst_20 = arith.constant dense<0.000000e+00> : vector<128x256xf32>
    %45 = tpu.matmul %43, %44, %cst_20 {dimension_numbers = #tpu.dot_dimension_numbers<[1], [0], [0], [1], [0, 0, 1, 1], [], []>} : vector<128x64xbf16>, vector<64x256xbf16>, vector<128x256xf32> -> vector<128x256xf32>
    %cst_21 = arith.constant 5.000000e-01 : f32
    %46 = vector.broadcast %cst_21 : f32 to vector<128x256xf32>
    %47 = arith.mulf %45, %46 : vector<128x256xf32>
    %48 = arith.truncf %47 : vector<128x256xf32> to vector<128x256xbf16>
    %c0_22 = arith.constant 0 : index
    %c0_23 = arith.constant 0 : index
    %49 = vector.load %arg4[%c0_22, %c0_23] : memref<128x256xbf16, #tpu.memory_space<vmem>>, vector<128x256xbf16>
    tpu.vector_store %arg4[%c0_22, %c0_23], %48 {strides = array<i32>} : memref<128x256xbf16, #tpu.memory_space<vmem>>, vector<128x256xbf16>,
    return
  }
  func.func @transform_0(%arg0: i32) -> (i32, i32) {
    %c0_i32 = arith.constant 0 : i32
    %c0_i32_0 = arith.constant 0 : i32
    return %arg0, %c0_i32 : i32, i32
  }
  func.func @transform_1(%arg0: i32) -> (i32, i32) {
    %c0_i32 = arith.constant 0 : i32
    %c0_i32_0 = arith.constant 0 : i32
    %c0_i32_1 = arith.constant 0 : i32
    return %c0_i32, %c0_i32_0 : i32, i32
  }
  func.func @transform_2(%arg0: i32) -> (i32, i32) {
    %c0_i32 = arith.constant 0 : i32
    %c0_i32_0 = arith.constant 0 : i32
    %c0_i32_1 = arith.constant 0 : i32
    return %c0_i32, %c0_i32_0 : i32, i32
  }
  func.func @transform_3(%arg0: i32) -> (i32, i32) {
    %c0_i32 = arith.constant 0 : i32
    %c0_i32_0 = arith.constant 0 : i32
    return %arg0, %c0_i32 : i32, i32
  }
}

</mosaic_0001>

<llo_original>
// kernel: tpu_custom_call.1
$region0: #{tpu_custom_call.1}
  #allocation0 [shape = 'u32[]', space=smem, size = 0x4, offset = 0x4, fixed_abs, tag = 'smem constant byte address 0x4 - core index']
  #allocation1 [shape = 'u32[72,128]{1,0:T(1,128)}', space=vmem, size = 0x9000, scoped, tag = 'internal scratch']
  %s0 = inlined_call_operand.hbm [shape: bf16[512,256], index: 0, kind: input, shape index: {}]
  %s1 = inlined_call_operand.vmem [shape: bf16[256,64], index: 1, kind: input, shape index: {}]
  %s2 = inlined_call_operand.vmem [shape: bf16[64,256], index: 2, kind: input, shape index: {}]
  %s3 = inlined_call_operand.hbm [shape: bf16[512,256], index: 3, kind: output, shape index: {}]
  %s4 = sld [smem:[#allocation0]]
  $region49: #{tpu_custom_call.1} parent=0
    _
  %s6 = ssub.s32 1, %s4
  %s7 = scalar_select 0, %s6, %s4
  $region1: #{tpu_custom_call.1} parent=0
    #allocation2 [shape = 'u8[131072]{0}', space=vmem, size = 0x20000, scoped, tag = 'input window, operand 0']
    #allocation3 [shape = 's32[2]{0}', space=sflag, size = 0x8, scoped, tag = 'scoped memory for tpu_custom_call.1']
    #allocation4 [shape = 's32[2]{0}', space=sflag, size = 0x8, scoped, tag = 'scoped memory for tpu_custom_call.1']
    #allocation5 [shape = 'u8[131072]{0}', space=vmem, size = 0x20000, scoped, tag = 'output window, operand 0']
    %8 = vsyncpa [#allocation3], 0
    %s9 = scalar_lea.sflag [#allocation3], 1
    %10 = vsyncpa %s9, 0
    %11 = vsyncpa [#allocation4], 0
    %s12 = scalar_lea.sflag [#allocation4], 1
    %13 = vsyncpa %s12, 0
    loop: start=0, step=1, limit=6
    $region2: #{tpu_custom_call.1} parent=1 // loop_pre_header
      _
    $region3: #{tpu_custom_call.1} parent=1 // loop_header
      %s15 = sphi 0, %s19
      %p16 = scmp.ge.s32.totalorder %s15, 6
      %s25 = sphi 0, %s27
      %s28 = sphi 0, %s25
      %s29 = sphi 0, %s28
      %s45 = sphi 0, %s29
      %s49 = sphi 0, %s49
      %s51 = sphi 0, %s49
      %s52 = sphi 0, %s51
      %s66 = sphi 0, %s52
      %s70 = sphi 0, %s70
      %s72 = sphi 0, %s70
      %s73 = sphi 0, %s72
      %s87 = sphi 0, %s73
      %s93 = sphi 0, %s95
      %s96 = sphi 0, %s93
      %s97 = sphi 0, %s96
      %s113 = sphi 0, %s97
    $region4: #{tpu_custom_call.1} parent=1 // loop_header_branch
      %18 = sbr.rel (%p16) target = $region8
    $region5: #{tpu_custom_call.1} parent=1 // loop_body
      %s20 = ssub.s32 %s15, 1
      %s21 = ssub.s32 %s15, 2
      %s22 = sadd.s32 %s15, 1
      %s23 = ssub.s32 %s15, %s22
      %p24 = scmp.eq.s32.totalorder %s23, 0
      %s26 = sadd.s32 %s25, 1
      %s27 = scalar_select %p24, %s25, %s26
      %p30 = pneg %p24
      %p31 = scmp.eq.s32.totalorder %s15, 3
      %p32 = por %p30, %p31
      %p33 = scmp.ne.s32.totalorder %s25, %s28
      %p34 = scmp.eq.s32.totalorder %s15, 0
      %p35 = por %p33, %p34
      %p36 = scmp.ne.s32.totalorder %s25, %s28
      %p37 = scmp.eq.s32.totalorder %s20, 3
      %p38 = por %p36, %p37
      %p39 = scmp.ne.s32.totalorder %s28, %s29
      %p40 = scmp.eq.s32.totalorder %s20, 0
      %p41 = por %p39, %p40
      %p42 = scmp.ne.s32.totalorder %s28, %s29
      %p43 = scmp.eq.s32.totalorder %s21, 3
      %p44 = por %p42, %p43
      %p46 = scmp.ne.s32.totalorder %s29, %s45
      %p47 = scmp.eq.s32.totalorder %s21, 0
      %p48 = por %p46, %p47
      %s50 = sadd.s32 %s49, 1
      %p53 = scmp.eq.s32.totalorder %s15, 3
      %p54 = scmp.ne.s32.totalorder %s49, %s51
      %p55 = scmp.eq.s32.totalorder %s15, 0
      %p56 = por %p54, %p55
      %p57 = scmp.ne.s32.totalorder %s49, %s51
      %p58 = scmp.eq.s32.totalorder %s20, 3
      %p59 = por %p57, %p58
      %p60 = scmp.ne.s32.totalorder %s51, %s52
      %p61 = scmp.eq.s32.totalorder %s20, 0
      %p62 = por %p60, %p61
      %p63 = scmp.ne.s32.totalorder %s51, %s52
      %p64 = scmp.eq.s32.totalorder %s21, 3
      %p65 = por %p63, %p64
      %p67 = scmp.ne.s32.totalorder %s52, %s66
      %p68 = scmp.eq.s32.totalorder %s21, 0
      %p69 = por %p67, %p68
      %s71 = sadd.s32 %s70, 1
      %p74 = scmp.eq.s32.totalorder %s15, 3
      %p75 = scmp.ne.s32.totalorder %s70, %s72
      %p76 = scmp.eq.s32.totalorder %s15, 0
      %p77 = por %p75, %p76
      %p78 = scmp.ne.s32.totalorder %s70, %s72
      %p79 = scmp.eq.s32.totalorder %s20, 3
      %p80 = por %p78, %p79
      %p81 = scmp.ne.s32.totalorder %s72, %s73
      %p82 = scmp.eq.s32.totalorder %s20, 0
      %p83 = por %p81, %p82
      %p84 = scmp.ne.s32.totalorder %s72, %s73
      %p85 = scmp.eq.s32.totalorder %s21, 3
      %p86 = por %p84, %p85
      %p88 = scmp.ne.s32.totalorder %s73, %s87
      %p89 = scmp.eq.s32.totalorder %s21, 0
      %p90 = por %p88, %p89
      %s91 = ssub.s32 %s15, %s22
      %p92 = scmp.eq.s32.totalorder %s91, 0
      %s94 = sadd.s32 %s93, 1
      %s95 = scalar_select %p92, %s93, %s94
      %p98 = pneg %p92
      %p99 = scmp.eq.s32.totalorder %s15, 3
      %p100 = por %p98, %p99
      %p101 = scmp.ne.s32.totalorder %s93, %s96
      %p102 = scmp.eq.s32.totalorder %s15, 0
      %p103 = por %p101, %p102
      %p104 = scmp.ne.s32.totalorder %s93, %s96
      %p105 = scmp.eq.s32.totalorder %s20, 3
      %p106 = por %p104, %p105
      %p107 = scmp.ne.s32.totalorder %s96, %s97
      %p108 = scmp.eq.s32.totalorder %s20, 0
      %p109 = por %p107, %p108
      %p110 = scmp.ne.s32.totalorder %s96, %s97
      %p111 = scmp.eq.s32.totalorder %s21, 3
      %p112 = por %p110, %p111
      %p114 = scmp.ne.s32.totalorder %s97, %s113
      %p115 = scmp.eq.s32.totalorder %s21, 0
      %p116 = por %p114, %p115
      %p117 = scmp.le.s32.totalorder 1, %s15
      %p118 = scmp.lt.s32.totalorder %s15, 5
      %p119 = pnand %p117, %p118
      %p120 = pneg %p119
      // Predicated region
      $region9: #{tpu_custom_call.1} parent=5 // pred_check
        _
      $region10: #{tpu_custom_call.1} parent=5 // pred_check_branch
        %122 = sbr.rel (%p119) target = $region12
      $region11: #{tpu_custom_call.1} parent=5 // pred_region
        %s123 = ssub.s32 %s15, 1
        // Predicated region
        $region13: #{tpu_custom_call.1} parent=11 // pred_check
          %p124 = pneg %p62
        $region14: #{tpu_custom_call.1} parent=11 // pred_check_branch
          %126 = sbr.rel (%p124) target = $region16
        $region15: #{tpu_custom_call.1} parent=11 // pred_region
          _
        $region16: #{tpu_custom_call.1} parent=11 // pred_fallthru
          _
        // Predicated region
        $region17: #{tpu_custom_call.1} parent=11 // pred_check
          %p127 = pneg %p83
        $region18: #{tpu_custom_call.1} parent=11 // pred_check_branch
          %129 = sbr.rel (%p127) target = $region20
        $region19: #{tpu_custom_call.1} parent=11 // pred_region
          _
        $region20: #{tpu_custom_call.1} parent=11 // pred_fallthru
          _
      $region12: #{tpu_custom_call.1} parent=5 // pred_fallthru
        _
      %p130 = scmp.lt.s32.totalorder %s15, 4
      // Predicated region
      $region21: #{tpu_custom_call.1} parent=5 // pred_check
        %p131 = pneg %p130
      $region22: #{tpu_custom_call.1} parent=5 // pred_check_branch
        %133 = sbr.rel (%p131) target = $region24
      $region23: #{tpu_custom_call.1} parent=5 // pred_region
        // Predicated region
        $region25: #{tpu_custom_call.1} parent=23 // pred_check
          %p134 = pneg %p35
        $region26: #{tpu_custom_call.1} parent=23 // pred_check_branch
          %136 = sbr.rel (%p134) target = $region28
        $region27: #{tpu_custom_call.1} parent=23 // pred_region
          %s137 = sand.u32 %s25, 1
          %s138 = scalar_lea.sflag [#allocation3], %s137
          %s139 = sand.u32 %s25, 1
          %s140 = smul.addr %s139, 128
          %s141 = scalar_lea.vmem [#allocation2], %s140
          %s142 = smul.u32 16, %s15
          %144 = vsyncadd %s138, 0
          %s145 = smul.addr %s142, 2
          %s146 = smul.addr %s145, 4
          %s147 = scalar_lea.hbm %s0, %s146
          %s148 = sshll.u32 %s147, 4
          %s149 = int_to_ptr.hbm [resolvable:$true] %s148
          %s150 = sshll.u32 %s141, 4
          %s151 = int_to_ptr.vmem [resolvable:$true] %s150
          %156 = dma.hbm_to_vmem [thread:$0]  %s149, 2048, %s151, %s138, 128, 128, 8
        $region28: #{tpu_custom_call.1} parent=23 // pred_fallthru
          _
      $region24: #{tpu_custom_call.1} parent=5 // pred_fallthru
        _
      %p157 = scmp.le.s32.totalorder 1, %s15
      %p158 = scmp.lt.s32.totalorder %s15, 5
      %p159 = pnand %p157, %p158
      %p160 = pneg %p159
      // Predicated region
      $region29: #{tpu_custom_call.1} parent=5 // pred_check
        _
      $region30: #{tpu_custom_call.1} parent=5 // pred_check_branch
        %162 = sbr.rel (%p159) target = $region32
      $region31: #{tpu_custom_call.1} parent=5 // pred_region
        %s163 = ssub.s32 %s15, 1
        %s164 = sand.u32 %s28, 1
        %s165 = scalar_lea.sflag [#allocation3], %s164
        %s166 = sand.u32 %s28, 1
        %s167 = smul.addr %s166, 128
        %s168 = scalar_lea.vmem [#allocation2], %s167
        // Predicated region
        $region33: #{tpu_custom_call.1} parent=31 // pred_check
          %p169 = pneg %p41
        $region34: #{tpu_custom_call.1} parent=31 // pred_check_branch
          %171 = sbr.rel (%p169) target = $region36
        $region35: #{tpu_custom_call.1} parent=31 // pred_region
          %173 = dma.done %s165, 2048
        $region36: #{tpu_custom_call.1} parent=31 // pred_fallthru
          _
        %s174 = sand.u32 %s28, 1
        %s175 = scalar_lea.sflag [#allocation3], %s174
        %s176 = sand.u32 %s28, 1
        %s177 = smul.addr %s176, 128
        %s178 = scalar_lea.vmem [#allocation2], %s177
        %p179 = pneg %p41
        %p180 = pneg %p38
        %p181 = pneg %p62
        %p182 = pneg %p59
        %p183 = pneg %p83
        %p184 = pneg %p80
        %p185 = pneg %p109
        %p186 = pneg %p106
        %s187 = sand.u32 %s96, 1
        %s188 = scalar_lea.sflag [#allocation4], %s187
        %s189 = sand.u32 %s96, 1
        %s190 = smul.addr %s189, 128
        %s191 = scalar_lea.vmem [#allocation5], %s190
        %s192 = smul.u32 16, %s20
        %s193 = smul.u32 16, %s20
        %v195 = vld [vmem:[%s168] sm:$0xff]
        %v196 = vld [vmem:[%s168 + $0x8] sm:$0xff]
        %v197 = vld [vmem:[%s168 + $0x10] sm:$0xff]
        %v198 = vld [vmem:[%s168 + $0x18] sm:$0xff]
        %v199 = vld [vmem:[%s168 + $0x20] sm:$0xff]
        %v200 = vld [vmem:[%s168 + $0x28] sm:$0xff]
        %v201 = vld [vmem:[%s168 + $0x30] sm:$0xff]
        %v202 = vld [vmem:[%s168 + $0x38] sm:$0xff]
        %v203 = vld [vmem:[%s168 + $0x40] sm:$0xff]
        %v204 = vld [vmem:[%s168 + $0x48] sm:$0xff]
        %v205 = vld [vmem:[%s168 + $0x50] sm:$0xff]
        %v206 = vld [vmem:[%s168 + $0x58] sm:$0xff]
        %v207 = vld [vmem:[%s168 + $0x60] sm:$0xff]
        %v208 = vld [vmem:[%s168 + $0x68] sm:$0xff]
        %v209 = vld [vmem:[%s168 + $0x70] sm:$0xff]
        %v210 = vld [vmem:[%s168 + $0x78] sm:$0xff]
        %v211 = vld [vmem:[%s1] sm:$0xf]
        %v212 = vld [vmem:[%s1 + $0x4] sm:$0xf]
        %v213 = vld [vmem:[%s1 + $0x8] sm:$0xf]
        %v214 = vld [vmem:[%s1 + $0xc] sm:$0xf]
        %v215 = vld [vmem:[%s1 + $0x10] sm:$0xf]
        %v216 = vld [vmem:[%s1 + $0x14] sm:$0xf]
        %v217 = vld [vmem:[%s1 + $0x18] sm:$0xf]
        %v218 = vld [vmem:[%s1 + $0x1c] sm:$0xf]
        %v219 = vld [vmem:[%s1 + $0x20] sm:$0xf]
        %v220 = vld [vmem:[%s1 + $0x24] sm:$0xf]
        %v221 = vld [vmem:[%s1 + $0x28] sm:$0xf]
        %v222 = vld [vmem:[%s1 + $0x2c] sm:$0xf]
        %v223 = vld [vmem:[%s1 + $0x30] sm:$0xf]
        %v224 = vld [vmem:[%s1 + $0x34] sm:$0xf]
        %v225 = vld [vmem:[%s1 + $0x38] sm:$0xf]
        %v226 = vld [vmem:[%s1 + $0x3c] sm:$0xf]
        %v227 = vld [vmem:[%s1 + $0x40] sm:$0xf]
        %v228 = vld [vmem:[%s1 + $0x44] sm:$0xf]
        %v229 = vld [vmem:[%s1 + $0x48] sm:$0xf]
        %v230 = vld [vmem:[%s1 + $0x4c] sm:$0xf]
        %v231 = vld [vmem:[%s1 + $0x50] sm:$0xf]
        %v232 = vld [vmem:[%s1 + $0x54] sm:$0xf]
        %v233 = vld [vmem:[%s1 + $0x58] sm:$0xf]
        %v234 = vld [vmem:[%s1 + $0x5c] sm:$0xf]
        %v235 = vld [vmem:[%s1 + $0x60] sm:$0xf]
        %v236 = vld [vmem:[%s1 + $0x64] sm:$0xf]
        %v237 = vld [vmem:[%s1 + $0x68] sm:$0xf]
        %v238 = vld [vmem:[%s1 + $0x6c] sm:$0xf]
        %v239 = vld [vmem:[%s1 + $0x70] sm:$0xf]
        %v240 = vld [vmem:[%s1 + $0x74] sm:$0xf]
        %v241 = vld [vmem:[%s1 + $0x78] sm:$0xf]
        %v242 = vld [vmem:[%s1 + $0x7c] sm:$0xf]
        %v259 = vunpack.c.l.b16 %v195
        %v260 = vunpack.c.h.b16 %v195
        %v261 = vunpack.c.l.b16 %v196
        %v262 = vunpack.c.h.b16 %v196
        %v263 = vunpack.c.l.b16 %v197
        %v264 = vunpack.c.h.b16 %v197
        %v265 = vunpack.c.l.b16 %v198
        %v266 = vunpack.c.h.b16 %v198
        %v267 = vunpack.c.l.b16 %v199
        %v268 = vunpack.c.h.b16 %v199
        %v269 = vunpack.c.l.b16 %v200
        %v270 = vunpack.c.h.b16 %v200
        %v271 = vunpack.c.l.b16 %v201
        %v272 = vunpack.c.h.b16 %v201
        %v273 = vunpack.c.l.b16 %v202
        %v274 = vunpack.c.h.b16 %v202
        %v275 = vunpack.c.l.b16 %v203
        %v276 = vunpack.c.h.b16 %v203
        %v277 = vunpack.c.l.b16 %v204
        %v278 = vunpack.c.h.b16 %v204
        %v279 = vunpack.c.l.b16 %v205
        %v280 = vunpack.c.h.b16 %v205
        %v281 = vunpack.c.l.b16 %v206
        %v282 = vunpack.c.h.b16 %v206
        %v283 = vunpack.c.l.b16 %v207
        %v284 = vunpack.c.h.b16 %v207
        %v285 = vunpack.c.l.b16 %v208
        %v286 = vunpack.c.h.b16 %v208
        %v287 = vunpack.c.l.b16 %v209
        %v288 = vunpack.c.h.b16 %v209
        %v289 = vunpack.c.l.b16 %v210
        %v290 = vunpack.c.h.b16 %v210
        %v291 = vpack.c.b16 %v261, %v259
        %v292 = vpack.c.b16 %v262, %v260
        %v293 = vpack.c.b16 %v265, %v263
        %v294 = vpack.c.b16 %v266, %v264
        %v295 = vpack.c.b16 %v269, %v267
        %v296 = vpack.c.b16 %v270, %v268
        %v297 = vpack.c.b16 %v273, %v271
        %v298 = vpack.c.b16 %v274, %v272
        %v299 = vpack.c.b16 %v277, %v275
        %v300 = vpack.c.b16 %v278, %v276
        %v301 = vpack.c.b16 %v281, %v279
        %v302 = vpack.c.b16 %v282, %v280
        %v303 = vpack.c.b16 %v285, %v283
        %v304 = vpack.c.b16 %v286, %v284
        %v305 = vpack.c.b16 %v289, %v287
        %v306 = vpack.c.b16 %v290, %v288
        %v355 = vunpack.c.l.b16 %v211
        %v356 = vunpack.c.l.b16 %v212
        %v357 = vunpack.c.l.b16 %v213
        %v358 = vunpack.c.l.b16 %v214
        %v359 = vunpack.c.l.b16 %v215
        %v360 = vunpack.c.l.b16 %v216
        %v361 = vunpack.c.l.b16 %v217
        %v362 = vunpack.c.l.b16 %v218
        %v363 = vunpack.c.l.b16 %v219
        %v364 = vunpack.c.l.b16 %v220
        %v365 = vunpack.c.l.b16 %v221
        %v366 = vunpack.c.l.b16 %v222
        %v367 = vunpack.c.l.b16 %v223
        %v368 = vunpack.c.l.b16 %v224
        %v369 = vunpack.c.l.b16 %v225
        %v370 = vunpack.c.l.b16 %v226
        %v371 = vunpack.c.l.b16 %v227
        %v372 = vunpack.c.l.b16 %v228
        %v373 = vunpack.c.l.b16 %v229
        %v374 = vunpack.c.l.b16 %v230
        %v375 = vunpack.c.l.b16 %v231
        %v376 = vunpack.c.l.b16 %v232
        %v377 = vunpack.c.l.b16 %v233
        %v378 = vunpack.c.l.b16 %v234
        %v379 = vunpack.c.l.b16 %v235
        %v380 = vunpack.c.l.b16 %v236
        %v381 = vunpack.c.l.b16 %v237
        %v382 = vunpack.c.l.b16 %v238
        %v383 = vunpack.c.l.b16 %v239
        %v384 = vunpack.c.l.b16 %v240
        %v385 = vunpack.c.l.b16 %v241
        %v386 = vunpack.c.l.b16 %v242
        %v387 = vpack.c.b16 %v356, %v355
        %v388 = vpack.c.b16 %v358, %v357
        %v389 = vpack.c.b16 %v360, %v359
        %v390 = vpack.c.b16 %v362, %v361
        %v391 = vpack.c.b16 %v364, %v363
        %v392 = vpack.c.b16 %v366, %v365
        %v393 = vpack.c.b16 %v368, %v367
        %v394 = vpack.c.b16 %v370, %v369
        %v395 = vpack.c.b16 %v372, %v371
        %v396 = vpack.c.b16 %v374, %v373
        %v397 = vpack.c.b16 %v376, %v375
        %v398 = vpack.c.b16 %v378, %v377
        %v399 = vpack.c.b16 %v380, %v379
        %v400 = vpack.c.b16 %v382, %v381
        %v401 = vpack.c.b16 %v384, %v383
        %v402 = vpack.c.b16 %v386, %v385
        %419 = vmatpush.bf16.msra.mxu0 %v394
        %420 = vmatpush.bf16.msra.mxu0 %v393
        %421 = vmatpush.bf16.msra.mxu0 %v392
        %422 = vmatpush.bf16.msra.mxu0 %v391
        %423 = vmatpush.bf16.msra.mxu0 %v390
        %424 = vmatpush.bf16.msra.mxu0 %v389
        %425 = vmatpush.bf16.msra.mxu0 %v388
        %426 = vmatpush.bf16.msra.mxu0 %v387
        %427 = vmatmul.bf16.gmra.mxu0 %v291
        %v428 = vpop.f32.mrf.mxu0
        %v429 = vadd.f32 0.0, %v428
        %v430 = vpop.f32.mrf.mxu0
        %v431 = vadd.f32 0.0, %v430
        %432 = vmatmul.bf16.gmra.mxu0 %v293
        %v433 = vpop.f32.mrf.mxu0
        %v434 = vadd.f32 0.0, %v433
        %v435 = vpop.f32.mrf.mxu0
        %v436 = vadd.f32 0.0, %v435
        %437 = vmatmul.bf16.gmra.mxu0 %v295
        %v438 = vpop.f32.mrf.mxu0
        %v439 = vadd.f32 0.0, %v438
        %v440 = vpop.f32.mrf.mxu0
        %v441 = vadd.f32 0.0, %v440
        %442 = vmatmul.bf16.gmra.mxu0 %v297
        %v443 = vpop.f32.mrf.mxu0
        %v444 = vadd.f32 0.0, %v443
        %v445 = vpop.f32.mrf.mxu0
        %v446 = vadd.f32 0.0, %v445
        %447 = vmatmul.bf16.gmra.mxu0 %v299
        %v448 = vpop.f32.mrf.mxu0
        %v449 = vadd.f32 0.0, %v448
        %v450 = vpop.f32.mrf.mxu0
        %v451 = vadd.f32 0.0, %v450
        %452 = vmatmul.bf16.gmra.mxu0 %v301
        %v453 = vpop.f32.mrf.mxu0
        %v454 = vadd.f32 0.0, %v453
        %v455 = vpop.f32.mrf.mxu0
        %v456 = vadd.f32 0.0, %v455
        %457 = vmatmul.bf16.gmra.mxu0 %v303
        %v458 = vpop.f32.mrf.mxu0
        %v459 = vadd.f32 0.0, %v458
        %v460 = vpop.f32.mrf.mxu0
        %v461 = vadd.f32 0.0, %v460
        %462 = vmatmul.bf16.gmra.mxu0 %v305
        %v463 = vpop.f32.mrf.mxu0
        %v464 = vadd.f32 0.0, %v463
        %v465 = vpop.f32.mrf.mxu0
        %v466 = vadd.f32 0.0, %v465
        %467 = vdwg.mxu0
        %468 = vmatpush.bf16.msra.mxu0 %v402
        %469 = vmatpush.bf16.msra.mxu0 %v401
        %470 = vmatpush.bf16.msra.mxu0 %v400
        %471 = vmatpush.bf16.msra.mxu0 %v399
        %472 = vmatpush.bf16.msra.mxu0 %v398
        %473 = vmatpush.bf16.msra.mxu0 %v397
        %474 = vmatpush.bf16.msra.mxu0 %v396
        %475 = vmatpush.bf16.msra.mxu0 %v395
        %476 = vmatmul.bf16.gmra.mxu0 %v292
        %v477 = vpop.f32.mrf.mxu0
        %v478 = vadd.f32 %v429, %v477
        %v479 = vpop.f32.mrf.mxu0
        %v480 = vadd.f32 %v431, %v479
        %481 = vmatmul.bf16.gmra.mxu0 %v294
        %v482 = vpop.f32.mrf.mxu0
        %v483 = vadd.f32 %v434, %v482
        %v484 = vpop.f32.mrf.mxu0
        %v485 = vadd.f32 %v436, %v484
        %486 = vmatmul.bf16.gmra.mxu0 %v296
        %v487 = vpop.f32.mrf.mxu0
        %v488 = vadd.f32 %v439, %v487
        %v489 = vpop.f32.mrf.mxu0
        %v490 = vadd.f32 %v441, %v489
        %491 = vmatmul.bf16.gmra.mxu0 %v298
        %v492 = vpop.f32.mrf.mxu0
        %v493 = vadd.f32 %v444, %v492
        %v494 = vpop.f32.mrf.mxu0
        %v495 = vadd.f32 %v446, %v494
        %496 = vmatmul.bf16.gmra.mxu0 %v300
        %v497 = vpop.f32.mrf.mxu0
        %v498 = vadd.f32 %v449, %v497
        %v499 = vpop.f32.mrf.mxu0
        %v500 = vadd.f32 %v451, %v499
        %501 = vmatmul.bf16.gmra.mxu0 %v302
        %v502 = vpop.f32.mrf.mxu0
        %v503 = vadd.f32 %v454, %v502
        %v504 = vpop.f32.mrf.mxu0
        %v505 = vadd.f32 %v456, %v504
        %506 = vmatmul.bf16.gmra.mxu0 %v304
        %v507 = vpop.f32.mrf.mxu0
        %v508 = vadd.f32 %v459, %v507
        %v509 = vpop.f32.mrf.mxu0
        %v510 = vadd.f32 %v461, %v509
        %511 = vmatmul.bf16.gmra.mxu0 %v306
        %v512 = vpop.f32.mrf.mxu0
        %v513 = vadd.f32 %v464, %v512
        %v514 = vpop.f32.mrf.mxu0
        %v515 = vadd.f32 %v466, %v514
        %516 = vdwg.mxu0
        %v517 = vmul.f32 %v478, 0.5
        %v518 = vmul.f32 %v480, 0.5
        %v519 = vmul.f32 %v483, 0.5
        %v520 = vmul.f32 %v485, 0.5
        %v521 = vmul.f32 %v488, 0.5
        %v522 = vmul.f32 %v490, 0.5
        %v523 = vmul.f32 %v493, 0.5
        %v524 = vmul.f32 %v495, 0.5
        %v525 = vmul.f32 %v498, 0.5
        %v526 = vmul.f32 %v500, 0.5
        %v527 = vmul.f32 %v503, 0.5
        %v528 = vmul.f32 %v505, 0.5
        %v529 = vmul.f32 %v508, 0.5
        %v530 = vmul.f32 %v510, 0.5
        %v531 = vmul.f32 %v513, 0.5
        %v532 = vmul.f32 %v515, 0.5
        %v533 = vmul.f32 %v478, 0.70710677
        %v534 = vmul.f32 %v480, 0.70710677
        %v535 = vmul.f32 %v483, 0.70710677
        %v536 = vmul.f32 %v485, 0.70710677
        %v537 = vmul.f32 %v488, 0.70710677
        %v538 = vmul.f32 %v490, 0.70710677
        %v539 = vmul.f32 %v493, 0.70710677
        %v540 = vmul.f32 %v495, 0.70710677
        %v541 = vmul.f32 %v498, 0.70710677
        %v542 = vmul.f32 %v500, 0.70710677
        %v543 = vmul.f32 %v503, 0.70710677
        %v544 = vmul.f32 %v505, 0.70710677
        %v545 = vmul.f32 %v508, 0.70710677
        %v546 = vmul.f32 %v510, 0.70710677
        %v547 = vmul.f32 %v513, 0.70710677
        %v548 = vmul.f32 %v515, 0.70710677
        %vm549 = vcmp.ge.f32.partialorder %v533, 0.0
        %vm550 = vcmp.ge.f32.partialorder %v534, 0.0
        %vm551 = vcmp.ge.f32.partialorder %v535, 0.0
        %vm552 = vcmp.ge.f32.partialorder %v536, 0.0
        %vm553 = vcmp.ge.f32.partialorder %v537, 0.0
        %vm554 = vcmp.ge.f32.partialorder %v538, 0.0
        %vm555 = vcmp.ge.f32.partialorder %v539, 0.0
        %vm556 = vcmp.ge.f32.partialorder %v540, 0.0
        %vm557 = vcmp.ge.f32.partialorder %v541, 0.0
        %vm558 = vcmp.ge.f32.partialorder %v542, 0.0
        %vm559 = vcmp.ge.f32.partialorder %v543, 0.0
        %vm560 = vcmp.ge.f32.partialorder %v544, 0.0
        %vm561 = vcmp.ge.f32.partialorder %v545, 0.0
        %vm562 = vcmp.ge.f32.partialorder %v546, 0.0
        %vm563 = vcmp.ge.f32.partialorder %v547, 0.0
        %vm564 = vcmp.ge.f32.partialorder %v548, 0.0
        %v565 = vsel %vm549, 1.0, -1.0
        %v566 = vsel %vm550, 1.0, -1.0
        %v567 = vsel %vm551, 1.0, -1.0
        %v568 = vsel %vm552, 1.0, -1.0
        %v569 = vsel %vm553, 1.0, -1.0
        %v570 = vsel %vm554, 1.0, -1.0
        %v571 = vsel %vm555, 1.0, -1.0
        %v572 = vsel %vm556, 1.0, -1.0
        %v573 = vsel %vm557, 1.0, -1.0
        %v574 = vsel %vm558, 1.0, -1.0
        %v575 = vsel %vm559, 1.0, -1.0
        %v576 = vsel %vm560, 1.0, -1.0
        %v577 = vsel %vm561, 1.0, -1.0
        %v578 = vsel %vm562, 1.0, -1.0
        %v579 = vsel %vm563, 1.0, -1.0
        %v580 = vsel %vm564, 1.0, -1.0
        %v581 = vand.u32 2147483647, %v533
        %v582 = vand.u32 2147483647, %v534
        %v583 = vand.u32 2147483647, %v535
        %v584 = vand.u32 2147483647, %v536
        %v585 = vand.u32 2147483647, %v537
        %v586 = vand.u32 2147483647, %v538
        %v587 = vand.u32 2147483647, %v539
        %v588 = vand.u32 2147483647, %v540
        %v589 = vand.u32 2147483647, %v541
        %v590 = vand.u32 2147483647, %v542
        %v591 = vand.u32 2147483647, %v543
        %v592 = vand.u32 2147483647, %v544
        %v593 = vand.u32 2147483647, %v545
        %v594 = vand.u32 2147483647, %v546
        %v595 = vand.u32 2147483647, %v547
        %v596 = vand.u32 2147483647, %v548
        %v597 = vmul.f32 %v581, 0.3275911
        %v598 = vmul.f32 %v582, 0.3275911
        %v599 = vmul.f32 %v583, 0.3275911
        %v600 = vmul.f32 %v584, 0.3275911
        %v601 = vmul.f32 %v585, 0.3275911
        %v602 = vmul.f32 %v586, 0.3275911
        %v603 = vmul.f32 %v587, 0.3275911
        %v604 = vmul.f32 %v588, 0.3275911
        %v605 = vmul.f32 %v589, 0.3275911
        %v606 = vmul.f32 %v590, 0.3275911
        %v607 = vmul.f32 %v591, 0.3275911
        %v608 = vmul.f32 %v592, 0.3275911
        %v609 = vmul.f32 %v593, 0.3275911
        %v610 = vmul.f32 %v594, 0.3275911
        %v611 = vmul.f32 %v595, 0.3275911
        %v612 = vmul.f32 %v596, 0.3275911
        %v613 = vadd.f32 %v597, 1.0
        %v614 = vadd.f32 %v598, 1.0
        %v615 = vadd.f32 %v599, 1.0
        %v616 = vadd.f32 %v600, 1.0
        %v617 = vadd.f32 %v601, 1.0
        %v618 = vadd.f32 %v602, 1.0
        %v619 = vadd.f32 %v603, 1.0
        %v620 = vadd.f32 %v604, 1.0
        %v621 = vadd.f32 %v605, 1.0
        %v622 = vadd.f32 %v606, 1.0
        %v623 = vadd.f32 %v607, 1.0
        %v624 = vadd.f32 %v608, 1.0
        %v625 = vadd.f32 %v609, 1.0
        %v626 = vadd.f32 %v610, 1.0
        %v627 = vadd.f32 %v611, 1.0
        %v628 = vadd.f32 %v612, 1.0
        %v629 = vrcp.pop %v613
        %v630 = vrcp.pop %v614
        %v631 = vrcp.pop %v615
        %v632 = vrcp.pop %v616
        %v633 = vrcp.pop %v617
        %v634 = vrcp.pop %v618
        %v635 = vrcp.pop %v619
        %v636 = vrcp.pop %v620
        %v637 = vrcp.pop %v621
        %v638 = vrcp.pop %v622
        %v639 = vrcp.pop %v623
        %v640 = vrcp.pop %v624
        %v641 = vrcp.pop %v625
        %v642 = vrcp.pop %v626
        %v643 = vrcp.pop %v627
        %v644 = vrcp.pop %v628
        %v645 = vmul.f32 %v629, 1.0614054
        %v646 = vmul.f32 %v630, 1.0614054
        %v647 = vmul.f32 %v631, 1.0614054
        %v648 = vmul.f32 %v632, 1.0614054
        %v649 = vmul.f32 %v633, 1.0614054
        %v650 = vmul.f32 %v634, 1.0614054
        %v651 = vmul.f32 %v635, 1.0614054
        %v652 = vmul.f32 %v636, 1.0614054
        %v653 = vmul.f32 %v637, 1.0614054
        %v654 = vmul.f32 %v638, 1.0614054
        %v655 = vmul.f32 %v639, 1.0614054
        %v656 = vmul.f32 %v640, 1.0614054
        %v657 = vmul.f32 %v641, 1.0614054
        %v658 = vmul.f32 %v642, 1.0614054
        %v659 = vmul.f32 %v643, 1.0614054
        %v660 = vmul.f32 %v644, 1.0614054
        %v661 = vadd.f32 %v645, -1.4531521
        %v662 = vadd.f32 %v646, -1.4531521
        %v663 = vadd.f32 %v647, -1.4531521
        %v664 = vadd.f32 %v648, -1.4531521
        %v665 = vadd.f32 %v649, -1.4531521
        %v666 = vadd.f32 %v650, -1.4531521
        %v667 = vadd.f32 %v651, -1.4531521
        %v668 = vadd.f32 %v652, -1.4531521
        %v669 = vadd.f32 %v653, -1.4531521
        %v670 = vadd.f32 %v654, -1.4531521
        %v671 = vadd.f32 %v655, -1.4531521
        %v672 = vadd.f32 %v656, -1.4531521
        %v673 = vadd.f32 %v657, -1.4531521
        %v674 = vadd.f32 %v658, -1.4531521
        %v675 = vadd.f32 %v659, -1.4531521
        %v676 = vadd.f32 %v660, -1.4531521
        %v677 = vmul.f32 %v661, %v629
        %v678 = vmul.f32 %v662, %v630
        %v679 = vmul.f32 %v663, %v631
        %v680 = vmul.f32 %v664, %v632
        %v681 = vmul.f32 %v665, %v633
        %v682 = vmul.f32 %v666, %v634
        %v683 = vmul.f32 %v667, %v635
        %v684 = vmul.f32 %v668, %v636
        %v685 = vmul.f32 %v669, %v637
        %v686 = vmul.f32 %v670, %v638
        %v687 = vmul.f32 %v671, %v639
        %v688 = vmul.f32 %v672, %v640
        %v689 = vmul.f32 %v673, %v641
        %v690 = vmul.f32 %v674, %v642
        %v691 = vmul.f32 %v675, %v643
        %v692 = vmul.f32 %v676, %v644
        %v693 = vadd.f32 %v677, 1.4214138
        %v694 = vadd.f32 %v678, 1.4214138
        %v695 = vadd.f32 %v679, 1.4214138
        %v696 = vadd.f32 %v680, 1.4214138
        %v697 = vadd.f32 %v681, 1.4214138
        %v698 = vadd.f32 %v682, 1.4214138
        %v699 = vadd.f32 %v683, 1.4214138
        %v700 = vadd.f32 %v684, 1.4214138
        %v701 = vadd.f32 %v685, 1.4214138
        %v702 = vadd.f32 %v686, 1.4214138
        %v703 = vadd.f32 %v687, 1.4214138
        %v704 = vadd.f32 %v688, 1.4214138
        %v705 = vadd.f32 %v689, 1.4214138
        %v706 = vadd.f32 %v690, 1.4214138
        %v707 = vadd.f32 %v691, 1.4214138
        %v708 = vadd.f32 %v692, 1.4214138
        %v709 = vmul.f32 %v693, %v629
        %v710 = vmul.f32 %v694, %v630
        %v711 = vmul.f32 %v695, %v631
        %v712 = vmul.f32 %v696, %v632
        %v713 = vmul.f32 %v697, %v633
        %v714 = vmul.f32 %v698, %v634
        %v715 = vmul.f32 %v699, %v635
        %v716 = vmul.f32 %v700, %v636
        %v717 = vmul.f32 %v701, %v637
        %v718 = vmul.f32 %v702, %v638
        %v719 = vmul.f32 %v703, %v639
        %v720 = vmul.f32 %v704, %v640
        %v721 = vmul.f32 %v705, %v641
        %v722 = vmul.f32 %v706, %v642
        %v723 = vmul.f32 %v707, %v643
        %v724 = vmul.f32 %v708, %v644
        %v725 = vadd.f32 %v709, -0.28449672
        %v726 = vadd.f32 %v710, -0.28449672
        %v727 = vadd.f32 %v711, -0.28449672
        %v728 = vadd.f32 %v712, -0.28449672
        %v729 = vadd.f32 %v713, -0.28449672
        %v730 = vadd.f32 %v714, -0.28449672
        %v731 = vadd.f32 %v715, -0.28449672
        %v732 = vadd.f32 %v716, -0.28449672
        %v733 = vadd.f32 %v717, -0.28449672
        %v734 = vadd.f32 %v718, -0.28449672
        %v735 = vadd.f32 %v719, -0.28449672
        %v736 = vadd.f32 %v720, -0.28449672
        %v737 = vadd.f32 %v721, -0.28449672
        %v738 = vadd.f32 %v722, -0.28449672
        %v739 = vadd.f32 %v723, -0.28449672
        %v740 = vadd.f32 %v724, -0.28449672
        %v741 = vmul.f32 %v725, %v629
        %v742 = vmul.f32 %v726, %v630
        %v743 = vmul.f32 %v727, %v631
        %v744 = vmul.f32 %v728, %v632
        %v745 = vmul.f32 %v729, %v633
        %v746 = vmul.f32 %v730, %v634
        %v747 = vmul.f32 %v731, %v635
        %v748 = vmul.f32 %v732, %v636
        %v749 = vmul.f32 %v733, %v637
        %v750 = vmul.f32 %v734, %v638
        %v751 = vmul.f32 %v735, %v639
        %v752 = vmul.f32 %v736, %v640
        %v753 = vmul.f32 %v737, %v641
        %v754 = vmul.f32 %v738, %v642
        %v755 = vmul.f32 %v739, %v643
        %v756 = vmul.f32 %v740, %v644
        %v757 = vadd.f32 %v741, 0.2548296
        %v758 = vadd.f32 %v742, 0.2548296
        %v759 = vadd.f32 %v743, 0.2548296
        %v760 = vadd.f32 %v744, 0.2548296
        %v761 = vadd.f32 %v745, 0.2548296
        %v762 = vadd.f32 %v746, 0.2548296
        %v763 = vadd.f32 %v747, 0.2548296
        %v764 = vadd.f32 %v748, 0.2548296
        %v765 = vadd.f32 %v749, 0.2548296
        %v766 = vadd.f32 %v750, 0.2548296
        %v767 = vadd.f32 %v751, 0.2548296
        %v768 = vadd.f32 %v752, 0.2548296
        %v769 = vadd.f32 %v753, 0.2548296
        %v770 = vadd.f32 %v754, 0.2548296
        %v771 = vadd.f32 %v755, 0.2548296
        %v772 = vadd.f32 %v756, 0.2548296
        %v773 = vmul.f32 %v757, %v629
        %v774 = vmul.f32 %v758, %v630
        %v775 = vmul.f32 %v759, %v631
        %v776 = vmul.f32 %v760, %v632
        %v777 = vmul.f32 %v761, %v633
        %v778 = vmul.f32 %v762, %v634
        %v779 = vmul.f32 %v763, %v635
        %v780 = vmul.f32 %v764, %v636
        %v781 = vmul.f32 %v765, %v637
        %v782 = vmul.f32 %v766, %v638
        %v783 = vmul.f32 %v767, %v639
        %v784 = vmul.f32 %v768, %v640
        %v785 = vmul.f32 %v769, %v641
        %v786 = vmul.f32 %v770, %v642
        %v787 = vmul.f32 %v771, %v643
        %v788 = vmul.f32 %v772, %v644
        %v789 = vsub.f32 0.0, %v581
        %v790 = vsub.f32 0.0, %v582
        %v791 = vsub.f32 0.0, %v583
        %v792 = vsub.f32 0.0, %v584
        %v793 = vsub.f32 0.0, %v585
        %v794 = vsub.f32 0.0, %v586
        %v795 = vsub.f32 0.0, %v587
        %v796 = vsub.f32 0.0, %v588
        %v797 = vsub.f32 0.0, %v589
        %v798 = vsub.f32 0.0, %v590
        %v799 = vsub.f32 0.0, %v591
        %v800 = vsub.f32 0.0, %v592
        %v801 = vsub.f32 0.0, %v593
        %v802 = vsub.f32 0.0, %v594
        %v803 = vsub.f32 0.0, %v595
        %v804 = vsub.f32 0.0, %v596
        %v805 = vmul.f32 %v789, %v581
        %v806 = vmul.f32 %v790, %v582
        %v807 = vmul.f32 %v791, %v583
        %v808 = vmul.f32 %v792, %v584
        %v809 = vmul.f32 %v793, %v585
        %v810 = vmul.f32 %v794, %v586
        %v811 = vmul.f32 %v795, %v587
        %v812 = vmul.f32 %v796, %v588
        %v813 = vmul.f32 %v797, %v589
        %v814 = vmul.f32 %v798, %v590
        %v815 = vmul.f32 %v799, %v591
        %v816 = vmul.f32 %v800, %v592
        %v817 = vmul.f32 %v801, %v593
        %v818 = vmul.f32 %v802, %v594
        %v819 = vmul.f32 %v803, %v595
        %v820 = vmul.f32 %v804, %v596
        %v821 = vmul.f32 %v805, 1.442695
        %v822 = vpow.pop %v821
        %v823 = vmul.f32 %v806, 1.442695
        %v824 = vpow.pop %v823
        %v825 = vmul.f32 %v807, 1.442695
        %v826 = vpow.pop %v825
        %v827 = vmul.f32 %v808, 1.442695
        %v828 = vpow.pop %v827
        %v829 = vmul.f32 %v809, 1.442695
        %v830 = vpow.pop %v829
        %v831 = vmul.f32 %v810, 1.442695
        %v832 = vpow.pop %v831
        %v833 = vmul.f32 %v811, 1.442695
        %v834 = vpow.pop %v833
        %v835 = vmul.f32 %v812, 1.442695
        %v836 = vpow.pop %v835
        %v837 = vmul.f32 %v813, 1.442695
        %v838 = vpow.pop %v837
        %v839 = vmul.f32 %v814, 1.442695
        %v840 = vpow.pop %v839
        %v841 = vmul.f32 %v815, 1.442695
        %v842 = vpow.pop %v841
        %v843 = vmul.f32 %v816, 1.442695
        %v844 = vpow.pop %v843
        %v845 = vmul.f32 %v817, 1.442695
        %v846 = vpow.pop %v845
        %v847 = vmul.f32 %v818, 1.442695
        %v848 = vpow.pop %v847
        %v849 = vmul.f32 %v819, 1.442695
        %v850 = vpow.pop %v849
        %v851 = vmul.f32 %v820, 1.442695
        %v852 = vpow.pop %v851
        %v853 = vmul.f32 %v773, %v822
        %v854 = vmul.f32 %v774, %v824
        %v855 = vmul.f32 %v775, %v826
        %v856 = vmul.f32 %v776, %v828
        %v857 = vmul.f32 %v777, %v830
        %v858 = vmul.f32 %v778, %v832
        %v859 = vmul.f32 %v779, %v834
        %v860 = vmul.f32 %v780, %v836
        %v861 = vmul.f32 %v781, %v838
        %v862 = vmul.f32 %v782, %v840
        %v863 = vmul.f32 %v783, %v842
        %v864 = vmul.f32 %v784, %v844
        %v865 = vmul.f32 %v785, %v846
        %v866 = vmul.f32 %v786, %v848
        %v867 = vmul.f32 %v787, %v850
        %v868 = vmul.f32 %v788, %v852
        %v869 = vsub.f32 1.0, %v853
        %v870 = vsub.f32 1.0, %v854
        %v871 = vsub.f32 1.0, %v855
        %v872 = vsub.f32 1.0, %v856
        %v873 = vsub.f32 1.0, %v857
        %v874 = vsub.f32 1.0, %v858
        %v875 = vsub.f32 1.0, %v859
        %v876 = vsub.f32 1.0, %v860
        %v877 = vsub.f32 1.0, %v861
        %v878 = vsub.f32 1.0, %v862
        %v879 = vsub.f32 1.0, %v863
        %v880 = vsub.f32 1.0, %v864
        %v881 = vsub.f32 1.0, %v865
        %v882 = vsub.f32 1.0, %v866
        %v883 = vsub.f32 1.0, %v867
        %v884 = vsub.f32 1.0, %v868
        %v885 = vmul.f32 %v565, %v869
        %v886 = vmul.f32 %v566, %v870
        %v887 = vmul.f32 %v567, %v871
        %v888 = vmul.f32 %v568, %v872
        %v889 = vmul.f32 %v569, %v873
        %v890 = vmul.f32 %v570, %v874
        %v891 = vmul.f32 %v571, %v875
        %v892 = vmul.f32 %v572, %v876
        %v893 = vmul.f32 %v573, %v877
        %v894 = vmul.f32 %v574, %v878
        %v895 = vmul.f32 %v575, %v879
        %v896 = vmul.f32 %v576, %v880
        %v897 = vmul.f32 %v577, %v881
        %v898 = vmul.f32 %v578, %v882
        %v899 = vmul.f32 %v579, %v883
        %v900 = vmul.f32 %v580, %v884
        %v901 = vadd.f32 %v885, 1.0
        %v902 = vadd.f32 %v886, 1.0
        %v903 = vadd.f32 %v887, 1.0
        %v904 = vadd.f32 %v888, 1.0
        %v905 = vadd.f32 %v889, 1.0
        %v906 = vadd.f32 %v890, 1.0
        %v907 = vadd.f32 %v891, 1.0
        %v908 = vadd.f32 %v892, 1.0
        %v909 = vadd.f32 %v893, 1.0
        %v910 = vadd.f32 %v894, 1.0
        %v911 = vadd.f32 %v895, 1.0
        %v912 = vadd.f32 %v896, 1.0
        %v913 = vadd.f32 %v897, 1.0
        %v914 = vadd.f32 %v898, 1.0
        %v915 = vadd.f32 %v899, 1.0
        %v916 = vadd.f32 %v900, 1.0
        %v917 = vmul.f32 %v517, %v901
        %v918 = vmul.f32 %v518, %v902
        %v919 = vmul.f32 %v519, %v903
        %v920 = vmul.f32 %v520, %v904
        %v921 = vmul.f32 %v521, %v905
        %v922 = vmul.f32 %v522, %v906
        %v923 = vmul.f32 %v523, %v907
        %v924 = vmul.f32 %v524, %v908
        %v925 = vmul.f32 %v525, %v909
        %v926 = vmul.f32 %v526, %v910
        %v927 = vmul.f32 %v527, %v911
        %v928 = vmul.f32 %v528, %v912
        %v929 = vmul.f32 %v529, %v913
        %v930 = vmul.f32 %v530, %v914
        %v931 = vmul.f32 %v531, %v915
        %v932 = vmul.f32 %v532, %v916
        %v933 = vpack.c.bf16 %v918, %v917
        %v934 = vpack.c.bf16 %v920, %v919
        %v935 = vpack.c.bf16 %v922, %v921
        %v936 = vpack.c.bf16 %v924, %v923
        %v937 = vpack.c.bf16 %v926, %v925
        %v938 = vpack.c.bf16 %v928, %v927
        %v939 = vpack.c.bf16 %v930, %v929
        %v940 = vpack.c.bf16 %v932, %v931
        %v941 = vld [vmem:[%s2] sm:$0xff]
        %v942 = vld [vmem:[%s2 + $0x8] sm:$0xff]
        %v943 = vld [vmem:[%s2 + $0x10] sm:$0xff]
        %v944 = vld [vmem:[%s2 + $0x18] sm:$0xff]
        %v945 = vld [vmem:[%s2 + $0x20] sm:$0xff]
        %v946 = vld [vmem:[%s2 + $0x28] sm:$0xff]
        %v947 = vld [vmem:[%s2 + $0x30] sm:$0xff]
        %v948 = vld [vmem:[%s2 + $0x38] sm:$0xff]
        %v957 = vunpack.c.l.b16 %v941
        %v958 = vunpack.c.h.b16 %v941
        %v959 = vunpack.c.l.b16 %v942
        %v960 = vunpack.c.h.b16 %v942
        %v961 = vunpack.c.l.b16 %v943
        %v962 = vunpack.c.h.b16 %v943
        %v963 = vunpack.c.l.b16 %v944
        %v964 = vunpack.c.h.b16 %v944
        %v965 = vunpack.c.l.b16 %v945
        %v966 = vunpack.c.h.b16 %v945
        %v967 = vunpack.c.l.b16 %v946
        %v968 = vunpack.c.h.b16 %v946
        %v969 = vunpack.c.l.b16 %v947
        %v970 = vunpack.c.h.b16 %v947
        %v971 = vunpack.c.l.b16 %v948
        %v972 = vunpack.c.h.b16 %v948
        %v973 = vpack.c.b16 %v959, %v957
        %v974 = vpack.c.b16 %v960, %v958
        %v975 = vpack.c.b16 %v963, %v961
        %v976 = vpack.c.b16 %v964, %v962
        %v977 = vpack.c.b16 %v967, %v965
        %v978 = vpack.c.b16 %v968, %v966
        %v979 = vpack.c.b16 %v971, %v969
        %v980 = vpack.c.b16 %v972, %v970
        %vm989 = vcmask 523264
        %v991 = vsel %vm989, %v933, 0
        %v994 = vsel %vm989, %v934, 0
        %v997 = vsel %vm989, %v935, 0
        %v1000 = vsel %vm989, %v936, 0
        %v1003 = vsel %vm989, %v937, 0
        %v1006 = vsel %vm989, %v938, 0
        %v1009 = vsel %vm989, %v939, 0
        %v1012 = vsel %vm989, %v940, 0
        %1014 = vmatpush.bf16.msra.mxu0 0
        %1015 = vmatpush.bf16.msra.mxu0 0
        %1016 = vmatpush.bf16.msra.mxu0 0
        %1017 = vmatpush.bf16.msra.mxu0 0
        %1018 = vmatpush.bf16.msra.mxu0 %v979
        %1019 = vmatpush.bf16.msra.mxu0 %v977
        %1020 = vmatpush.bf16.msra.mxu0 %v975
        %1021 = vmatpush.bf16.msra.mxu0 %v973
        %1022 = vmatmul.bf16.gmra.mxu0 %v991
        %v1023 = vpop.f32.mrf.mxu0
        %v1024 = vadd.f32 0.0, %v1023
        %v1025 = vpop.f32.mrf.mxu0
        %v1026 = vadd.f32 0.0, %v1025
        %1027 = vmatmul.bf16.gmra.mxu0 %v994
        %v1028 = vpop.f32.mrf.mxu0
        %v1029 = vadd.f32 0.0, %v1028
        %v1030 = vpop.f32.mrf.mxu0
        %v1031 = vadd.f32 0.0, %v1030
        %1032 = vmatmul.bf16.gmra.mxu0 %v997
        %v1033 = vpop.f32.mrf.mxu0
        %v1034 = vadd.f32 0.0, %v1033
        %v1035 = vpop.f32.mrf.mxu0
        %v1036 = vadd.f32 0.0, %v1035
        %1037 = vmatmul.bf16.gmra.mxu0 %v1000
        %v1038 = vpop.f32.mrf.mxu0
        %v1039 = vadd.f32 0.0, %v1038
        %v1040 = vpop.f32.mrf.mxu0
        %v1041 = vadd.f32 0.0, %v1040
        %1042 = vmatmul.bf16.gmra.mxu0 %v1003
        %v1043 = vpop.f32.mrf.mxu0
        %v1044 = vadd.f32 0.0, %v1043
        %v1045 = vpop.f32.mrf.mxu0
        %v1046 = vadd.f32 0.0, %v1045
        %1047 = vmatmul.bf16.gmra.mxu0 %v1006
        %v1048 = vpop.f32.mrf.mxu0
        %v1049 = vadd.f32 0.0, %v1048
        %v1050 = vpop.f32.mrf.mxu0
        %v1051 = vadd.f32 0.0, %v1050
        %1052 = vmatmul.bf16.gmra.mxu0 %v1009
        %v1053 = vpop.f32.mrf.mxu0
        %v1054 = vadd.f32 0.0, %v1053
        %v1055 = vpop.f32.mrf.mxu0
        %v1056 = vadd.f32 0.0, %v1055
        %1057 = vmatmul.bf16.gmra.mxu0 %v1012
        %v1058 = vpop.f32.mrf.mxu0
        %v1059 = vadd.f32 0.0, %v1058
        %v1060 = vpop.f32.mrf.mxu0
        %v1061 = vadd.f32 0.0, %v1060
        %1062 = vdwg.mxu0
        %1063 = vmatpush.bf16.msra.mxu0 0
        %1064 = vmatpush.bf16.msra.mxu0 0
        %1065 = vmatpush.bf16.msra.mxu0 0
        %1066 = vmatpush.bf16.msra.mxu0 0
        %1067 = vmatpush.bf16.msra.mxu0 %v980
        %1068 = vmatpush.bf16.msra.mxu0 %v978
        %1069 = vmatpush.bf16.msra.mxu0 %v976
        %1070 = vmatpush.bf16.msra.mxu0 %v974
        %1071 = vmatmul.bf16.gmra.mxu0 %v991
        %v1072 = vpop.f32.mrf.mxu0
        %v1073 = vadd.f32 0.0, %v1072
        %v1074 = vpop.f32.mrf.mxu0
        %v1075 = vadd.f32 0.0, %v1074
        %1076 = vmatmul.bf16.gmra.mxu0 %v994
        %v1077 = vpop.f32.mrf.mxu0
        %v1078 = vadd.f32 0.0, %v1077
        %v1079 = vpop.f32.mrf.mxu0
        %v1080 = vadd.f32 0.0, %v1079
        %1081 = vmatmul.bf16.gmra.mxu0 %v997
        %v1082 = vpop.f32.mrf.mxu0
        %v1083 = vadd.f32 0.0, %v1082
        %v1084 = vpop.f32.mrf.mxu0
        %v1085 = vadd.f32 0.0, %v1084
        %1086 = vmatmul.bf16.gmra.mxu0 %v1000
        %v1087 = vpop.f32.mrf.mxu0
        %v1088 = vadd.f32 0.0, %v1087
        %v1089 = vpop.f32.mrf.mxu0
        %v1090 = vadd.f32 0.0, %v1089
        %1091 = vmatmul.bf16.gmra.mxu0 %v1003
        %v1092 = vpop.f32.mrf.mxu0
        %v1093 = vadd.f32 0.0, %v1092
        %v1094 = vpop.f32.mrf.mxu0
        %v1095 = vadd.f32 0.0, %v1094
        %1096 = vmatmul.bf16.gmra.mxu0 %v1006
        %v1097 = vpop.f32.mrf.mxu0
        %v1098 = vadd.f32 0.0, %v1097
        %v1099 = vpop.f32.mrf.mxu0
        %v1100 = vadd.f32 0.0, %v1099
        %1101 = vmatmul.bf16.gmra.mxu0 %v1009
        %v1102 = vpop.f32.mrf.mxu0
        %v1103 = vadd.f32 0.0, %v1102
        %v1104 = vpop.f32.mrf.mxu0
        %v1105 = vadd.f32 0.0, %v1104
        %1106 = vmatmul.bf16.gmra.mxu0 %v1012
        %v1107 = vpop.f32.mrf.mxu0
        %v1108 = vadd.f32 0.0, %v1107
        %v1109 = vpop.f32.mrf.mxu0
        %v1110 = vadd.f32 0.0, %v1109
        %1111 = vdwg.mxu0
        %v1112 = vmul.f32 %v1024, 0.5
        %v1113 = vmul.f32 %v1073, 0.5
        %v1114 = vmul.f32 %v1026, 0.5
        %v1115 = vmul.f32 %v1075, 0.5
        %v1116 = vmul.f32 %v1029, 0.5
        %v1117 = vmul.f32 %v1078, 0.5
        %v1118 = vmul.f32 %v1031, 0.5
        %v1119 = vmul.f32 %v1080, 0.5
        %v1120 = vmul.f32 %v1034, 0.5
        %v1121 = vmul.f32 %v1083, 0.5
        %v1122 = vmul.f32 %v1036, 0.5
        %v1123 = vmul.f32 %v1085, 0.5
        %v1124 = vmul.f32 %v1039, 0.5
        %v1125 = vmul.f32 %v1088, 0.5
        %v1126 = vmul.f32 %v1041, 0.5
        %v1127 = vmul.f32 %v1090, 0.5
        %v1128 = vmul.f32 %v1044, 0.5
        %v1129 = vmul.f32 %v1093, 0.5
        %v1130 = vmul.f32 %v1046, 0.5
        %v1131 = vmul.f32 %v1095, 0.5
        %v1132 = vmul.f32 %v1049, 0.5
        %v1133 = vmul.f32 %v1098, 0.5
        %v1134 = vmul.f32 %v1051, 0.5
        %v1135 = vmul.f32 %v1100, 0.5
        %v1136 = vmul.f32 %v1054, 0.5
        %v1137 = vmul.f32 %v1103, 0.5
        %v1138 = vmul.f32 %v1056, 0.5
        %v1139 = vmul.f32 %v1105, 0.5
        %v1140 = vmul.f32 %v1059, 0.5
        %v1141 = vmul.f32 %v1108, 0.5
        %v1142 = vmul.f32 %v1061, 0.5
        %v1143 = vmul.f32 %v1110, 0.5
        %v1144 = vpack.c.bf16 %v1113, %v1112
        %v1145 = vpack.c.bf16 %v1115, %v1114
        %v1146 = vpack.c.bf16 %v1117, %v1116
        %v1147 = vpack.c.bf16 %v1119, %v1118
        %v1148 = vpack.c.bf16 %v1121, %v1120
        %v1149 = vpack.c.bf16 %v1123, %v1122
        %v1150 = vpack.c.bf16 %v1125, %v1124
        %v1151 = vpack.c.bf16 %v1127, %v1126
        %v1152 = vpack.c.bf16 %v1129, %v1128
        %v1153 = vpack.c.bf16 %v1131, %v1130
        %v1154 = vpack.c.bf16 %v1133, %v1132
        %v1155 = vpack.c.bf16 %v1135, %v1134
        %v1156 = vpack.c.bf16 %v1137, %v1136
        %v1157 = vpack.c.bf16 %v1139, %v1138
        %v1158 = vpack.c.bf16 %v1141, %v1140
        %v1159 = vpack.c.bf16 %v1143, %v1142
        %1160 = vst [vmem:[%s191] sm:$0xff] %v1144
        %1161 = vst [vmem:[%s191 + $0x8] sm:$0xff] %v1145
        %1162 = vst [vmem:[%s191 + $0x10] sm:$0xff] %v1146
        %1163 = vst [vmem:[%s191 + $0x18] sm:$0xff] %v1147
        %1164 = vst [vmem:[%s191 + $0x20] sm:$0xff] %v1148
        %1165 = vst [vmem:[%s191 + $0x28] sm:$0xff] %v1149
        %1166 = vst [vmem:[%s191 + $0x30] sm:$0xff] %v1150
        %1167 = vst [vmem:[%s191 + $0x38] sm:$0xff] %v1151
        %1168 = vst [vmem:[%s191 + $0x40] sm:$0xff] %v1152
        %1169 = vst [vmem:[%s191 + $0x48] sm:$0xff] %v1153
        %1170 = vst [vmem:[%s191 + $0x50] sm:$0xff] %v1154
        %1171 = vst [vmem:[%s191 + $0x58] sm:$0xff] %v1155
        %1172 = vst [vmem:[%s191 + $0x60] sm:$0xff] %v1156
        %1173 = vst [vmem:[%s191 + $0x68] sm:$0xff] %v1157
        %1174 = vst [vmem:[%s191 + $0x70] sm:$0xff] %v1158
        %1175 = vst [vmem:[%s191 + $0x78] sm:$0xff] %v1159
        %s1176 = sand.u32 %s96, 1
        %s1177 = scalar_lea.sflag [#allocation4], %s1176
        %s1178 = sand.u32 %s96, 1
        %s1179 = smul.addr %s1178, 128
        %s1180 = scalar_lea.vmem [#allocation5], %s1179
        // Predicated region
        $region37: #{tpu_custom_call.1} parent=31 // pred_check
          %p1181 = pneg %p106
        $region38: #{tpu_custom_call.1} parent=31 // pred_check_branch
          %1183 = sbr.rel (%p1181) target = $region40
        $region39: #{tpu_custom_call.1} parent=31 // pred_region
          %s1184 = smul.u32 16, %s20
          %1186 = vsyncadd %s1177, 0
          %s1187 = smul.addr %s1184, 2
          %s1188 = smul.addr %s1187, 4
          %s1189 = scalar_lea.hbm %s3, %s1188
          %s1190 = sshll.u32 %s1180, 4
          %s1191 = int_to_ptr.vmem [resolvable:$true] %s1190
          %s1192 = sshll.u32 %s1189, 4
          %s1193 = int_to_ptr.hbm [resolvable:$true] %s1192
          %1198 = dma.vmem_to_hbm [thread:$0]  %s1191, 2048, %s1193, %s1177, 128, 128, 8
        $region40: #{tpu_custom_call.1} parent=31 // pred_fallthru
          _
      $region32: #{tpu_custom_call.1} parent=5 // pred_fallthru
        _
      %p1199 = scmp.le.s32.totalorder 2, %s15
      // Predicated region
      $region41: #{tpu_custom_call.1} parent=5 // pred_check
        %p1200 = pneg %p1199
      $region42: #{tpu_custom_call.1} parent=5 // pred_check_branch
        %1202 = sbr.rel (%p1200) target = $region44
      $region43: #{tpu_custom_call.1} parent=5 // pred_region
        %s1203 = ssub.s32 %s15, 2
        // Predicated region
        $region45: #{tpu_custom_call.1} parent=43 // pred_check
          %p1204 = pneg %p112
        $region46: #{tpu_custom_call.1} parent=43 // pred_check_branch
          %1206 = sbr.rel (%p1204) target = $region48
        $region47: #{tpu_custom_call.1} parent=43 // pred_region
          %s1207 = sand.u32 %s97, 1
          %s1208 = scalar_lea.sflag [#allocation4], %s1207
          %s1209 = sand.u32 %s97, 1
          %s1210 = smul.addr %s1209, 128
          %s1211 = scalar_lea.vmem [#allocation5], %s1210
          %1213 = dma.done %s1208, 2048
        $region48: #{tpu_custom_call.1} parent=43 // pred_fallthru
          _
      $region44: #{tpu_custom_call.1} parent=5 // pred_fallthru
        _
    $region6: #{tpu_custom_call.1} parent=1 // loop_footer
      %s19 = sadd.s32 1, %s15
    $region7: #{tpu_custom_call.1} parent=1 // loop_footer_branch
      %14 = sbr.rel target = $region3
    $region8: #{tpu_custom_call.1} parent=1 // loop_exit
      _
    %1214 = vsyncpa [#allocation3], 1
    %s1215 = scalar_lea.sflag [#allocation3], 1
    %1216 = vsyncpa %s1215, 1
    %1217 = vsyncpa [#allocation4], 1
    %s1218 = scalar_lea.sflag [#allocation4], 1
    %1219 = vsyncpa %s1218, 1

// kernel: tpu_custom_call.1
$region0: #{tpu_custom_call.1}
  #allocation0 [shape = 'u32[]', space=smem, size = 0x4, offset = 0x4, fixed_abs, tag = 'smem constant byte address 0x4 - core index']
  #allocation1 [shape = 'u32[72,128]{1,0:T(1,128)}', space=vmem, size = 0x9000, scoped, tag = 'internal scratch']
  %s0 = inlined_call_operand.hbm [shape: bf16[512,256], index: 0, kind: input, shape index: {}]
  %s1 = inlined_call_operand.vmem [shape: bf16[256,64], index: 1, kind: input, shape index: {}]
  %s2 = inlined_call_operand.vmem [shape: bf16[64,256], index: 2, kind: input, shape index: {}]
  %s3 = inlined_call_operand.hbm [shape: bf16[512,256], index: 3, kind: output, shape index: {}]
  %s4 = sld [smem:[#allocation0]]
  $region49: #{tpu_custom_call.1} parent=0
    _
  %s6 = ssub.s32 1, %s4
  %s7 = scalar_select 0, %s6, %s4
  $region1: #{tpu_custom_call.1} parent=0
    #allocation2 [shape = 'u8[131072]{0}', space=vmem, size = 0x20000, scoped, tag = 'input window, operand 0']
    #allocation3 [shape = 's32[2]{0}', space=sflag, size = 0x8, scoped, tag = 'scoped memory for tpu_custom_call.1']
    #allocation4 [shape = 's32[2]{0}', space=sflag, size = 0x8, scoped, tag = 'scoped memory for tpu_custom_call.1']
    #allocation5 [shape = 'u8[131072]{0}', space=vmem, size = 0x20000, scoped, tag = 'output window, operand 0']
    %8 = vsyncpa [#allocation3], 0
    %s9 = scalar_lea.sflag [#allocation3], 1
    %10 = vsyncpa %s9, 0
    %11 = vsyncpa [#allocation4], 0
    %s12 = scalar_lea.sflag [#allocation4], 1
    %13 = vsyncpa %s12, 0
    loop: start=0, step=1, limit=6
    $region2: #{tpu_custom_call.1} parent=1 // loop_pre_header
      _
    $region3: #{tpu_custom_call.1} parent=1 // loop_header
      %s15 = sphi 0, %s19
      %p16 = scmp.ge.s32.totalorder %s15, 6
      %s25 = sphi 0, %s27
      %s28 = sphi 0, %s25
      %s29 = sphi 0, %s28
      %s45 = sphi 0, %s29
      %s49 = sphi 0, %s49
      %s51 = sphi 0, %s49
      %s52 = sphi 0, %s51
      %s66 = sphi 0, %s52
      %s70 = sphi 0, %s70
      %s72 = sphi 0, %s70
      %s73 = sphi 0, %s72
      %s87 = sphi 0, %s73
      %s93 = sphi 0, %s95
      %s96 = sphi 0, %s93
      %s97 = sphi 0, %s96
      %s113 = sphi 0, %s97
    $region4: #{tpu_custom_call.1} parent=1 // loop_header_branch
      %18 = sbr.rel (%p16) target = $region8
    $region5: #{tpu_custom_call.1} parent=1 // loop_body
      %s20 = ssub.s32 %s15, 1
      %s21 = ssub.s32 %s15, 2
      %s22 = sadd.s32 %s15, 1
      %s23 = ssub.s32 %s15, %s22
      %p24 = scmp.eq.s32.totalorder %s23, 0
      %s26 = sadd.s32 %s25, 1
      %s27 = scalar_select %p24, %s25, %s26
      %p30 = pneg %p24
      %p31 = scmp.eq.s32.totalorder %s15, 3
      %p32 = por %p30, %p31
      %p33 = scmp.ne.s32.totalorder %s25, %s28
      %p34 = scmp.eq.s32.totalorder %s15, 0
      %p35 = por %p33, %p34
      %p36 = scmp.ne.s32.totalorder %s25, %s28
      %p37 = scmp.eq.s32.totalorder %s20, 3
      %p38 = por %p36, %p37
      %p39 = scmp.ne.s32.totalorder %s28, %s29
      %p40 = scmp.eq.s32.totalorder %s20, 0
      %p41 = por %p39, %p40
      %p42 = scmp.ne.s32.totalorder %s28, %s29
      %p43 = scmp.eq.s32.totalorder %s21, 3
      %p44 = por %p42, %p43
      %p46 = scmp.ne.s32.totalorder %s29, %s45
      %p47 = scmp.eq.s32.totalorder %s21, 0
      %p48 = por %p46, %p47
      %s50 = sadd.s32 %s49, 1
      %p53 = scmp.eq.s32.totalorder %s15, 3
      %p54 = scmp.ne.s32.totalorder %s49, %s51
      %p55 = scmp.eq.s32.totalorder %s15, 0
      %p56 = por %p54, %p55
      %p57 = scmp.ne.s32.totalorder %s49, %s51
      %p58 = scmp.eq.s32.totalorder %s20, 3
      %p59 = por %p57, %p58
      %p60 = scmp.ne.s32.totalorder %s51, %s52
      %p61 = scmp.eq.s32.totalorder %s20, 0
      %p62 = por %p60, %p61
      %p63 = scmp.ne.s32.totalorder %s51, %s52
      %p64 = scmp.eq.s32.totalorder %s21, 3
      %p65 = por %p63, %p64
      %p67 = scmp.ne.s32.totalorder %s52, %s66
      %p68 = scmp.eq.s32.totalorder %s21, 0
      %p69 = por %p67, %p68
      %s71 = sadd.s32 %s70, 1
      %p74 = scmp.eq.s32.totalorder %s15, 3
      %p75 = scmp.ne.s32.totalorder %s70, %s72
      %p76 = scmp.eq.s32.totalorder %s15, 0
      %p77 = por %p75, %p76
      %p78 = scmp.ne.s32.totalorder %s70, %s72
      %p79 = scmp.eq.s32.totalorder %s20, 3
      %p80 = por %p78, %p79
      %p81 = scmp.ne.s32.totalorder %s72, %s73
      %p82 = scmp.eq.s32.totalorder %s20, 0
      %p83 = por %p81, %p82
      %p84 = scmp.ne.s32.totalorder %s72, %s73
      %p85 = scmp.eq.s32.totalorder %s21, 3
      %p86 = por %p84, %p85
      %p88 = scmp.ne.s32.totalorder %s73, %s87
      %p89 = scmp.eq.s32.totalorder %s21, 0
      %p90 = por %p88, %p89
      %s91 = ssub.s32 %s15, %s22
      %p92 = scmp.eq.s32.totalorder %s91, 0
      %s94 = sadd.s32 %s93, 1
      %s95 = scalar_select %p92, %s93, %s94
      %p98 = pneg %p92
      %p99 = scmp.eq.s32.totalorder %s15, 3
      %p100 = por %p98, %p99
      %p101 = scmp.ne.s32.totalorder %s93, %s96
      %p102 = scmp.eq.s32.totalorder %s15, 0
      %p103 = por %p101, %p102
      %p104 = scmp.ne.s32.totalorder %s93, %s96
      %p105 = scmp.eq.s32.totalorder %s20, 3
      %p106 = por %p104, %p105
      %p107 = scmp.ne.s32.totalorder %s96, %s97
      %p108 = scmp.eq.s32.totalorder %s20, 0
      %p109 = por %p107, %p108
      %p110 = scmp.ne.s32.totalorder %s96, %s97
      %p111 = scmp.eq.s32.totalorder %s21, 3
      %p112 = por %p110, %p111
      %p114 = scmp.ne.s32.totalorder %s97, %s113
      %p115 = scmp.eq.s32.totalorder %s21, 0
      %p116 = por %p114, %p115
      %p117 = scmp.le.s32.totalorder 1, %s15
      %p118 = scmp.lt.s32.totalorder %s15, 5
      %p119 = pnand %p117, %p118
      %p120 = pneg %p119
      // Predicated region
      $region9: #{tpu_custom_call.1} parent=5 // pred_check
        _
      $region10: #{tpu_custom_call.1} parent=5 // pred_check_branch
        %122 = sbr.rel (%p119) target = $region12
      $region11: #{tpu_custom_call.1} parent=5 // pred_region
        %s123 = ssub.s32 %s15, 1
        // Predicated region
        $region13: #{tpu_custom_call.1} parent=11 // pred_check
          %p124 = pneg %p62
        $region14: #{tpu_custom_call.1} parent=11 // pred_check_branch
          %126 = sbr.rel (%p124) target = $region16
        $region15: #{tpu_custom_call.1} parent=11 // pred_region
          _
        $region16: #{tpu_custom_call.1} parent=11 // pred_fallthru
          _
        // Predicated region
        $region17: #{tpu_custom_call.1} parent=11 // pred_check
          %p127 = pneg %p83
        $region18: #{tpu_custom_call.1} parent=11 // pred_check_branch
          %129 = sbr.rel (%p127) target = $region20
        $region19: #{tpu_custom_call.1} parent=11 // pred_region
          _
        $region20: #{tpu_custom_call.1} parent=11 // pred_fallthru
          _
      $region12: #{tpu_custom_call.1} parent=5 // pred_fallthru
        _
      %p130 = scmp.lt.s32.totalorder %s15, 4
      // Predicated region
      $region21: #{tpu_custom_call.1} parent=5 // pred_check
        %p131 = pneg %p130
      $region22: #{tpu_custom_call.1} parent=5 // pred_check_branch
        %133 = sbr.rel (%p131) target = $region24
      $region23: #{tpu_custom_call.1} parent=5 // pred_region
        // Predicated region
        $region25: #{tpu_custom_call.1} parent=23 // pred_check
          %p134 = pneg %p35
        $region26: #{tpu_custom_call.1} parent=23 // pred_check_branch
          %136 = sbr.rel (%p134) target = $region28
        $region27: #{tpu_custom_call.1} parent=23 // pred_region
          %s137 = sand.u32 %s25, 1
          %s138 = scalar_lea.sflag [#allocation3], %s137
          %s139 = sand.u32 %s25, 1
          %s140 = smul.addr %s139, 128
          %s141 = scalar_lea.vmem [#allocation2], %s140
          %s142 = smul.u32 16, %s15
          %144 = vsyncadd %s138, 0
          %s145 = smul.addr %s142, 2
          %s146 = smul.addr %s145, 4
          %s147 = scalar_lea.hbm %s0, %s146
          %s148 = sshll.u32 %s147, 4
          %s149 = int_to_ptr.hbm [resolvable:$true] %s148
          %s150 = sshll.u32 %s141, 4
          %s151 = int_to_ptr.vmem [resolvable:$true] %s150
          %156 = dma.hbm_to_vmem [thread:$0]  %s149, 2048, %s151, %s138, 128, 128, 8
        $region28: #{tpu_custom_call.1} parent=23 // pred_fallthru
          _
      $region24: #{tpu_custom_call.1} parent=5 // pred_fallthru
        _
      %p157 = scmp.le.s32.totalorder 1, %s15
      %p158 = scmp.lt.s32.totalorder %s15, 5
      %p159 = pnand %p157, %p158
      %p160 = pneg %p159
      // Predicated region
      $region29: #{tpu_custom_call.1} parent=5 // pred_check
        _
      $region30: #{tpu_custom_call.1} parent=5 // pred_check_branch
        %162 = sbr.rel (%p159) target = $region32
      $region31: #{tpu_custom_call.1} parent=5 // pred_region
        %s163 = ssub.s32 %s15, 1
        %s164 = sand.u32 %s28, 1
        %s165 = scalar_lea.sflag [#allocation3], %s164
        %s166 = sand.u32 %s28, 1
        %s167 = smul.addr %s166, 128
        %s168 = scalar_lea.vmem [#allocation2], %s167
        // Predicated region
        $region33: #{tpu_custom_call.1} parent=31 // pred_check
          %p169 = pneg %p41
        $region34: #{tpu_custom_call.1} parent=31 // pred_check_branch
          %171 = sbr.rel (%p169) target = $region36
        $region35: #{tpu_custom_call.1} parent=31 // pred_region
          %173 = dma.done %s165, 2048
        $region36: #{tpu_custom_call.1} parent=31 // pred_fallthru
          _
        %s174 = sand.u32 %s28, 1
        %s175 = scalar_lea.sflag [#allocation3], %s174
        %s176 = sand.u32 %s28, 1
        %s177 = smul.addr %s176, 128
        %s178 = scalar_lea.vmem [#allocation2], %s177
        %p179 = pneg %p41
        %p180 = pneg %p38
        %p181 = pneg %p62
        %p182 = pneg %p59
        %p183 = pneg %p83
        %p184 = pneg %p80
        %p185 = pneg %p109
        %p186 = pneg %p106
        %s187 = sand.u32 %s96, 1
        %s188 = scalar_lea.sflag [#allocation4], %s187
        %s189 = sand.u32 %s96, 1
        %s190 = smul.addr %s189, 128
        %s191 = scalar_lea.vmem [#allocation5], %s190
        %s192 = smul.u32 16, %s20
        %s193 = smul.u32 16, %s20
        %v195 = vld [vmem:[%s168] sm:$0xff]
        %v196 = vld [vmem:[%s168 + $0x8] sm:$0xff]
        %v197 = vld [vmem:[%s168 + $0x10] sm:$0xff]
        %v198 = vld [vmem:[%s168 + $0x18] sm:$0xff]
        %v199 = vld [vmem:[%s168 + $0x20] sm:$0xff]
        %v200 = vld [vmem:[%s168 + $0x28] sm:$0xff]
        %v201 = vld [vmem:[%s168 + $0x30] sm:$0xff]
        %v202 = vld [vmem:[%s168 + $0x38] sm:$0xff]
        %v203 = vld [vmem:[%s168 + $0x40] sm:$0xff]
        %v204 = vld [vmem:[%s168 + $0x48] sm:$0xff]
        %v205 = vld [vmem:[%s168 + $0x50] sm:$0xff]
        %v206 = vld [vmem:[%s168 + $0x58] sm:$0xff]
        %v207 = vld [vmem:[%s168 + $0x60] sm:$0xff]
        %v208 = vld [vmem:[%s168 + $0x68] sm:$0xff]
        %v209 = vld [vmem:[%s168 + $0x70] sm:$0xff]
        %v210 = vld [vmem:[%s168 + $0x78] sm:$0xff]
        %v211 = vld [vmem:[%s1] sm:$0xf]
        %v212 = vld [vmem:[%s1 + $0x4] sm:$0xf]
        %v213 = vld [vmem:[%s1 + $0x8] sm:$0xf]
        %v214 = vld [vmem:[%s1 + $0xc] sm:$0xf]
        %v215 = vld [vmem:[%s1 + $0x10] sm:$0xf]
        %v216 = vld [vmem:[%s1 + $0x14] sm:$0xf]
        %v217 = vld [vmem:[%s1 + $0x18] sm:$0xf]
        %v218 = vld [vmem:[%s1 + $0x1c] sm:$0xf]
        %v219 = vld [vmem:[%s1 + $0x20] sm:$0xf]
        %v220 = vld [vmem:[%s1 + $0x24] sm:$0xf]
        %v221 = vld [vmem:[%s1 + $0x28] sm:$0xf]
        %v222 = vld [vmem:[%s1 + $0x2c] sm:$0xf]
        %v223 = vld [vmem:[%s1 + $0x30] sm:$0xf]
        %v224 = vld [vmem:[%s1 + $0x34] sm:$0xf]
        %v225 = vld [vmem:[%s1 + $0x38] sm:$0xf]
        %v226 = vld [vmem:[%s1 + $0x3c] sm:$0xf]
        %v227 = vld [vmem:[%s1 + $0x40] sm:$0xf]
        %v228 = vld [vmem:[%s1 + $0x44] sm:$0xf]
        %v229 = vld [vmem:[%s1 + $0x48] sm:$0xf]
        %v230 = vld [vmem:[%s1 + $0x4c] sm:$0xf]
        %v231 = vld [vmem:[%s1 + $0x50] sm:$0xf]
        %v232 = vld [vmem:[%s1 + $0x54] sm:$0xf]
        %v233 = vld [vmem:[%s1 + $0x58] sm:$0xf]
        %v234 = vld [vmem:[%s1 + $0x5c] sm:$0xf]
        %v235 = vld [vmem:[%s1 + $0x60] sm:$0xf]
        %v236 = vld [vmem:[%s1 + $0x64] sm:$0xf]
        %v237 = vld [vmem:[%s1 + $0x68] sm:$0xf]
        %v238 = vld [vmem:[%s1 + $0x6c] sm:$0xf]
        %v239 = vld [vmem:[%s1 + $0x70] sm:$0xf]
        %v240 = vld [vmem:[%s1 + $0x74] sm:$0xf]
        %v241 = vld [vmem:[%s1 + $0x78] sm:$0xf]
        %v242 = vld [vmem:[%s1 + $0x7c] sm:$0xf]
        %v259 = vunpack.c.l.b16 %v195
        %v260 = vunpack.c.h.b16 %v195
        %v261 = vunpack.c.l.b16 %v196
        %v262 = vunpack.c.h.b16 %v196
        %v263 = vunpack.c.l.b16 %v197
        %v264 = vunpack.c.h.b16 %v197
        %v265 = vunpack.c.l.b16 %v198
        %v266 = vunpack.c.h.b16 %v198
        %v267 = vunpack.c.l.b16 %v199
        %v268 = vunpack.c.h.b16 %v199
        %v269 = vunpack.c.l.b16 %v200
        %v270 = vunpack.c.h.b16 %v200
        %v271 = vunpack.c.l.b16 %v201
        %v272 = vunpack.c.h.b16 %v201
        %v273 = vunpack.c.l.b16 %v202
        %v274 = vunpack.c.h.b16 %v202
        %v275 = vunpack.c.l.b16 %v203
        %v276 = vunpack.c.h.b16 %v203
        %v277 = vunpack.c.l.b16 %v204
        %v278 = vunpack.c.h.b16 %v204
        %v279 = vunpack.c.l.b16 %v205
        %v280 = vunpack.c.h.b16 %v205
        %v281 = vunpack.c.l.b16 %v206
        %v282 = vunpack.c.h.b16 %v206
        %v283 = vunpack.c.l.b16 %v207
        %v284 = vunpack.c.h.b16 %v207
        %v285 = vunpack.c.l.b16 %v208
        %v286 = vunpack.c.h.b16 %v208
        %v287 = vunpack.c.l.b16 %v209
        %v288 = vunpack.c.h.b16 %v209
        %v289 = vunpack.c.l.b16 %v210
        %v290 = vunpack.c.h.b16 %v210
        %v291 = vpack.c.b16 %v261, %v259
        %v292 = vpack.c.b16 %v262, %v260
        %v293 = vpack.c.b16 %v265, %v263
        %v294 = vpack.c.b16 %v266, %v264
        %v295 = vpack.c.b16 %v269, %v267
        %v296 = vpack.c.b16 %v270, %v268
        %v297 = vpack.c.b16 %v273, %v271
        %v298 = vpack.c.b16 %v274, %v272
        %v299 = vpack.c.b16 %v277, %v275
        %v300 = vpack.c.b16 %v278, %v276
        %v301 = vpack.c.b16 %v281, %v279
        %v302 = vpack.c.b16 %v282, %v280
        %v303 = vpack.c.b16 %v285, %v283
        %v304 = vpack.c.b16 %v286, %v284
        %v305 = vpack.c.b16 %v289, %v287
        %v306 = vpack.c.b16 %v290, %v288
        %v355 = vunpack.c.l.b16 %v211
        %v356 = vunpack.c.l.b16 %v212
        %v357 = vunpack.c.l.b16 %v213
        %v358 = vunpack.c.l.b16 %v214
        %v359 = vunpack.c.l.b16 %v215
        %v360 = vunpack.c.l.b16 %v216
        %v361 = vunpack.c.l.b16 %v217
        %v362 = vunpack.c.l.b16 %v218
        %v363 = vunpack.c.l.b16 %v219
        %v364 = vunpack.c.l.b16 %v220
        %v365 = vunpack.c.l.b16 %v221
        %v366 = vunpack.c.l.b16 %v222
        %v367 = vunpack.c.l.b16 %v223
        %v368 = vunpack.c.l.b16 %v224
        %v369 = vunpack.c.l.b16 %v225
        %v370 = vunpack.c.l.b16 %v226
        %v371 = vunpack.c.l.b16 %v227
        %v372 = vunpack.c.l.b16 %v228
        %v373 = vunpack.c.l.b16 %v229
        %v374 = vunpack.c.l.b16 %v230
        %v375 = vunpack.c.l.b16 %v231
        %v376 = vunpack.c.l.b16 %v232
        %v377 = vunpack.c.l.b16 %v233
        %v378 = vunpack.c.l.b16 %v234
        %v379 = vunpack.c.l.b16 %v235
        %v380 = vunpack.c.l.b16 %v236
        %v381 = vunpack.c.l.b16 %v237
        %v382 = vunpack.c.l.b16 %v238
        %v383 = vunpack.c.l.b16 %v239
        %v384 = vunpack.c.l.b16 %v240
        %v385 = vunpack.c.l.b16 %v241
        %v386 = vunpack.c.l.b16 %v242
        %v387 = vpack.c.b16 %v356, %v355
        %v388 = vpack.c.b16 %v358, %v357
        %v389 = vpack.c.b16 %v360, %v359
        %v390 = vpack.c.b16 %v362, %v361
        %v391 = vpack.c.b16 %v364, %v363
        %v392 = vpack.c.b16 %v366, %v365
        %v393 = vpack.c.b16 %v368, %v367
        %v394 = vpack.c.b16 %v370, %v369
        %v395 = vpack.c.b16 %v372, %v371
        %v396 = vpack.c.b16 %v374, %v373
        %v397 = vpack.c.b16 %v376, %v375
        %v398 = vpack.c.b16 %v378, %v377
        %v399 = vpack.c.b16 %v380, %v379
        %v400 = vpack.c.b16 %v382, %v381
        %v401 = vpack.c.b16 %v384, %v383
        %v402 = vpack.c.b16 %v386, %v385
        %419 = vmatpush.bf16.msra.mxu0 %v394
        %420 = vmatpush.bf16.msra.mxu0 %v393
        %421 = vmatpush.bf16.msra.mxu0 %v392
        %422 = vmatpush.bf16.msra.mxu0 %v391
        %423 = vmatpush.bf16.msra.mxu0 %v390
        %424 = vmatpush.bf16.msra.mxu0 %v389
        %425 = vmatpush.bf16.msra.mxu0 %v388
        %426 = vmatpush.bf16.msra.mxu0 %v387
        %427 = vmatmul.bf16.gmra.mxu0 %v291
        %v428 = vpop.f32.mrf.mxu0
        %v429 = vadd.f32 0.0, %v428
        %v430 = vpop.f32.mrf.mxu0
        %v431 = vadd.f32 0.0, %v430
        %432 = vmatmul.bf16.gmra.mxu0 %v293
        %v433 = vpop.f32.mrf.mxu0
        %v434 = vadd.f32 0.0, %v433
        %v435 = vpop.f32.mrf.mxu0
        %v436 = vadd.f32 0.0, %v435
        %437 = vmatmul.bf16.gmra.mxu0 %v295
        %v438 = vpop.f32.mrf.mxu0
        %v439 = vadd.f32 0.0, %v438
        %v440 = vpop.f32.mrf.mxu0
        %v441 = vadd.f32 0.0, %v440
        %442 = vmatmul.bf16.gmra.mxu0 %v297
        %v443 = vpop.f32.mrf.mxu0
        %v444 = vadd.f32 0.0, %v443
        %v445 = vpop.f32.mrf.mxu0
        %v446 = vadd.f32 0.0, %v445
        %447 = vmatmul.bf16.gmra.mxu0 %v299
        %v448 = vpop.f32.mrf.mxu0
        %v449 = vadd.f32 0.0, %v448
        %v450 = vpop.f32.mrf.mxu0
        %v451 = vadd.f32 0.0, %v450
        %452 = vmatmul.bf16.gmra.mxu0 %v301
        %v453 = vpop.f32.mrf.mxu0
        %v454 = vadd.f32 0.0, %v453
        %v455 = vpop.f32.mrf.mxu0
        %v456 = vadd.f32 0.0, %v455
        %457 = vmatmul.bf16.gmra.mxu0 %v303
        %v458 = vpop.f32.mrf.mxu0
        %v459 = vadd.f32 0.0, %v458
        %v460 = vpop.f32.mrf.mxu0
        %v461 = vadd.f32 0.0, %v460
        %462 = vmatmul.bf16.gmra.mxu0 %v305
        %v463 = vpop.f32.mrf.mxu0
        %v464 = vadd.f32 0.0, %v463
        %v465 = vpop.f32.mrf.mxu0
        %v466 = vadd.f32 0.0, %v465
        %467 = vdwg.mxu0
        %468 = vmatpush.bf16.msra.mxu0 %v402
        %469 = vmatpush.bf16.msra.mxu0 %v401
        %470 = vmatpush.bf16.msra.mxu0 %v400
        %471 = vmatpush.bf16.msra.mxu0 %v399
        %472 = vmatpush.bf16.msra.mxu0 %v398
        %473 = vmatpush.bf16.msra.mxu0 %v397
        %474 = vmatpush.bf16.msra.mxu0 %v396
        %475 = vmatpush.bf16.msra.mxu0 %v395
        %476 = vmatmul.bf16.gmra.mxu0 %v292
        %v477 = vpop.f32.mrf.mxu0
        %v478 = vadd.f32 %v429, %v477
        %v479 = vpop.f32.mrf.mxu0
        %v480 = vadd.f32 %v431, %v479
        %481 = vmatmul.bf16.gmra.mxu0 %v294
        %v482 = vpop.f32.mrf.mxu0
        %v483 = vadd.f32 %v434, %v482
        %v484 = vpop.f32.mrf.mxu0
        %v485 = vadd.f32 %v436, %v484
        %486 = vmatmul.bf16.gmra.mxu0 %v296
        %v487 = vpop.f32.mrf.mxu0
        %v488 = vadd.f32 %v439, %v487
        %v489 = vpop.f32.mrf.mxu0
        %v490 = vadd.f32 %v441, %v489
        %491 = vmatmul.bf16.gmra.mxu0 %v298
        %v492 = vpop.f32.mrf.mxu0
        %v493 = vadd.f32 %v444, %v492
        %v494 = vpop.f32.mrf.mxu0
        %v495 = vadd.f32 %v446, %v494
        %496 = vmatmul.bf16.gmra.mxu0 %v300
        %v497 = vpop.f32.mrf.mxu0
        %v498 = vadd.f32 %v449, %v497
        %v499 = vpop.f32.mrf.mxu0
        %v500 = vadd.f32 %v451, %v499
        %501 = vmatmul.bf16.gmra.mxu0 %v302
        %v502 = vpop.f32.mrf.mxu0
        %v503 = vadd.f32 %v454, %v502
        %v504 = vpop.f32.mrf.mxu0
        %v505 = vadd.f32 %v456, %v504
        %506 = vmatmul.bf16.gmra.mxu0 %v304
        %v507 = vpop.f32.mrf.mxu0
        %v508 = vadd.f32 %v459, %v507
        %v509 = vpop.f32.mrf.mxu0
        %v510 = vadd.f32 %v461, %v509
        %511 = vmatmul.bf16.gmra.mxu0 %v306
        %v512 = vpop.f32.mrf.mxu0
        %v513 = vadd.f32 %v464, %v512
        %v514 = vpop.f32.mrf.mxu0
        %v515 = vadd.f32 %v466, %v514
        %516 = vdwg.mxu0
        %v517 = vmul.f32 %v478, 0.5
        %v518 = vmul.f32 %v480, 0.5
        %v519 = vmul.f32 %v483, 0.5
        %v520 = vmul.f32 %v485, 0.5
        %v521 = vmul.f32 %v488, 0.5
        %v522 = vmul.f32 %v490, 0.5
        %v523 = vmul.f32 %v493, 0.5
        %v524 = vmul.f32 %v495, 0.5
        %v525 = vmul.f32 %v498, 0.5
        %v526 = vmul.f32 %v500, 0.5
        %v527 = vmul.f32 %v503, 0.5
        %v528 = vmul.f32 %v505, 0.5
        %v529 = vmul.f32 %v508, 0.5
        %v530 = vmul.f32 %v510, 0.5
        %v531 = vmul.f32 %v513, 0.5
        %v532 = vmul.f32 %v515, 0.5
        %v533 = vmul.f32 %v478, 0.70710677
        %v534 = vmul.f32 %v480, 0.70710677
        %v535 = vmul.f32 %v483, 0.70710677
        %v536 = vmul.f32 %v485, 0.70710677
        %v537 = vmul.f32 %v488, 0.70710677
        %v538 = vmul.f32 %v490, 0.70710677
        %v539 = vmul.f32 %v493, 0.70710677
        %v540 = vmul.f32 %v495, 0.70710677
        %v541 = vmul.f32 %v498, 0.70710677
        %v542 = vmul.f32 %v500, 0.70710677
        %v543 = vmul.f32 %v503, 0.70710677
        %v544 = vmul.f32 %v505, 0.70710677
        %v545 = vmul.f32 %v508, 0.70710677
        %v546 = vmul.f32 %v510, 0.70710677
        %v547 = vmul.f32 %v513, 0.70710677
        %v548 = vmul.f32 %v515, 0.70710677
        %vm549 = vcmp.ge.f32.partialorder %v533, 0.0
        %vm550 = vcmp.ge.f32.partialorder %v534, 0.0
        %vm551 = vcmp.ge.f32.partialorder %v535, 0.0
        %vm552 = vcmp.ge.f32.partialorder %v536, 0.0
        %vm553 = vcmp.ge.f32.partialorder %v537, 0.0
        %vm554 = vcmp.ge.f32.partialorder %v538, 0.0
        %vm555 = vcmp.ge.f32.partialorder %v539, 0.0
        %vm556 = vcmp.ge.f32.partialorder %v540, 0.0
        %vm557 = vcmp.ge.f32.partialorder %v541, 0.0
        %vm558 = vcmp.ge.f32.partialorder %v542, 0.0
        %vm559 = vcmp.ge.f32.partialorder %v543, 0.0
        %vm560 = vcmp.ge.f32.partialorder %v544, 0.0
        %vm561 = vcmp.ge.f32.partialorder %v545, 0.0
        %vm562 = vcmp.ge.f32.partialorder %v546, 0.0
        %vm563 = vcmp.ge.f32.partialorder %v547, 0.0
        %vm564 = vcmp.ge.f32.partialorder %v548, 0.0
        %v565 = vsel %vm549, 1.0, -1.0
        %v566 = vsel %vm550, 1.0, -1.0
        %v567 = vsel %vm551, 1.0, -1.0
        %v568 = vsel %vm552, 1.0, -1.0
        %v569 = vsel %vm553, 1.0, -1.0
        %v570 = vsel %vm554, 1.0, -1.0
        %v571 = vsel %vm555, 1.0, -1.0
        %v572 = vsel %vm556, 1.0, -1.0
        %v573 = vsel %vm557, 1.0, -1.0
        %v574 = vsel %vm558, 1.0, -1.0
        %v575 = vsel %vm559, 1.0, -1.0
        %v576 = vsel %vm560, 1.0, -1.0
        %v577 = vsel %vm561, 1.0, -1.0
        %v578 = vsel %vm562, 1.0, -1.0
        %v579 = vsel %vm563, 1.0, -1.0
        %v580 = vsel %vm564, 1.0, -1.0
        %v581 = vand.u32 2147483647, %v533
        %v582 = vand.u32 2147483647, %v534
        %v583 = vand.u32 2147483647, %v535
        %v584 = vand.u32 2147483647, %v536
        %v585 = vand.u32 2147483647, %v537
        %v586 = vand.u32 2147483647, %v538
        %v587 = vand.u32 2147483647, %v539
        %v588 = vand.u32 2147483647, %v540
        %v589 = vand.u32 2147483647, %v541
        %v590 = vand.u32 2147483647, %v542
        %v591 = vand.u32 2147483647, %v543
        %v592 = vand.u32 2147483647, %v544
        %v593 = vand.u32 2147483647, %v545
        %v594 = vand.u32 2147483647, %v546
        %v595 = vand.u32 2147483647, %v547
        %v596 = vand.u32 2147483647, %v548
        %v597 = vmul.f32 %v581, 0.3275911
        %v598 = vmul.f32 %v582, 0.3275911
        %v599 = vmul.f32 %v583, 0.3275911
        %v600 = vmul.f32 %v584, 0.3275911
        %v601 = vmul.f32 %v585, 0.3275911
        %v602 = vmul.f32 %v586, 0.3275911
        %v603 = vmul.f32 %v587, 0.3275911
        %v604 = vmul.f32 %v588, 0.3275911
        %v605 = vmul.f32 %v589, 0.3275911
        %v606 = vmul.f32 %v590, 0.3275911
        %v607 = vmul.f32 %v591, 0.3275911
        %v608 = vmul.f32 %v592, 0.3275911
        %v609 = vmul.f32 %v593, 0.3275911
        %v610 = vmul.f32 %v594, 0.3275911
        %v611 = vmul.f32 %v595, 0.3275911
        %v612 = vmul.f32 %v596, 0.3275911
        %v613 = vadd.f32 %v597, 1.0
        %v614 = vadd.f32 %v598, 1.0
        %v615 = vadd.f32 %v599, 1.0
        %v616 = vadd.f32 %v600, 1.0
        %v617 = vadd.f32 %v601, 1.0
        %v618 = vadd.f32 %v602, 1.0
        %v619 = vadd.f32 %v603, 1.0
        %v620 = vadd.f32 %v604, 1.0
        %v621 = vadd.f32 %v605, 1.0
        %v622 = vadd.f32 %v606, 1.0
        %v623 = vadd.f32 %v607, 1.0
        %v624 = vadd.f32 %v608, 1.0
        %v625 = vadd.f32 %v609, 1.0
        %v626 = vadd.f32 %v610, 1.0
        %v627 = vadd.f32 %v611, 1.0
        %v628 = vadd.f32 %v612, 1.0
        %v629 = vrcp.pop %v613
        %v630 = vrcp.pop %v614
        %v631 = vrcp.pop %v615
        %v632 = vrcp.pop %v616
        %v633 = vrcp.pop %v617
        %v634 = vrcp.pop %v618
        %v635 = vrcp.pop %v619
        %v636 = vrcp.pop %v620
        %v637 = vrcp.pop %v621
        %v638 = vrcp.pop %v622
        %v639 = vrcp.pop %v623
        %v640 = vrcp.pop %v624
        %v641 = vrcp.pop %v625
        %v642 = vrcp.pop %v626
        %v643 = vrcp.pop %v627
        %v644 = vrcp.pop %v628
        %v645 = vmul.f32 %v629, 1.0614054
        %v646 = vmul.f32 %v630, 1.0614054
        %v647 = vmul.f32 %v631, 1.0614054
        %v648 = vmul.f32 %v632, 1.0614054
        %v649 = vmul.f32 %v633, 1.0614054
        %v650 = vmul.f32 %v634, 1.0614054
        %v651 = vmul.f32 %v635, 1.0614054
        %v652 = vmul.f32 %v636, 1.0614054
        %v653 = vmul.f32 %v637, 1.0614054
        %v654 = vmul.f32 %v638, 1.0614054
        %v655 = vmul.f32 %v639, 1.0614054
        %v656 = vmul.f32 %v640, 1.0614054
        %v657 = vmul.f32 %v641, 1.0614054
        %v658 = vmul.f32 %v642, 1.0614054
        %v659 = vmul.f32 %v643, 1.0614054
        %v660 = vmul.f32 %v644, 1.0614054
        %v661 = vadd.f32 %v645, -1.4531521
        %v662 = vadd.f32 %v646, -1.4531521
        %v663 = vadd.f32 %v647, -1.4531521
        %v664 = vadd.f32 %v648, -1.4531521
        %v665 = vadd.f32 %v649, -1.4531521
        %v666 = vadd.f32 %v650, -1.4531521
        %v667 = vadd.f32 %v651, -1.4531521
        %v668 = vadd.f32 %v652, -1.4531521
        %v669 = vadd.f32 %v653, -1.4531521
        %v670 = vadd.f32 %v654, -1.4531521
        %v671 = vadd.f32 %v655, -1.4531521
        %v672 = vadd.f32 %v656, -1.4531521
        %v673 = vadd.f32 %v657, -1.4531521
        %v674 = vadd.f32 %v658, -1.4531521
        %v675 = vadd.f32 %v659, -1.4531521
        %v676 = vadd.f32 %v660, -1.4531521
        %v677 = vmul.f32 %v661, %v629
        %v678 = vmul.f32 %v662, %v630
        %v679 = vmul.f32 %v663, %v631
        %v680 = vmul.f32 %v664, %v632
        %v681 = vmul.f32 %v665, %v633
        %v682 = vmul.f32 %v666, %v634
        %v683 = vmul.f32 %v667, %v635
        %v684 = vmul.f32 %v668, %v636
        %v685 = vmul.f32 %v669, %v637
        %v686 = vmul.f32 %v670, %v638
        %v687 = vmul.f32 %v671, %v639
        %v688 = vmul.f32 %v672, %v640
        %v689 = vmul.f32 %v673, %v641
        %v690 = vmul.f32 %v674, %v642
        %v691 = vmul.f32 %v675, %v643
        %v692 = vmul.f32 %v676, %v644
        %v693 = vadd.f32 %v677, 1.4214138
        %v694 = vadd.f32 %v678, 1.4214138
        %v695 = vadd.f32 %v679, 1.4214138
        %v696 = vadd.f32 %v680, 1.4214138
        %v697 = vadd.f32 %v681, 1.4214138
        %v698 = vadd.f32 %v682, 1.4214138
        %v699 = vadd.f32 %v683, 1.4214138
        %v700 = vadd.f32 %v684, 1.4214138
        %v701 = vadd.f32 %v685, 1.4214138
        %v702 = vadd.f32 %v686, 1.4214138
        %v703 = vadd.f32 %v687, 1.4214138
        %v704 = vadd.f32 %v688, 1.4214138
        %v705 = vadd.f32 %v689, 1.4214138
        %v706 = vadd.f32 %v690, 1.4214138
        %v707 = vadd.f32 %v691, 1.4214138
        %v708 = vadd.f32 %v692, 1.4214138
        %v709 = vmul.f32 %v693, %v629
        %v710 = vmul.f32 %v694, %v630
        %v711 = vmul.f32 %v695, %v631
        %v712 = vmul.f32 %v696, %v632
        %v713 = vmul.f32 %v697, %v633
        %v714 = vmul.f32 %v698, %v634
        %v715 = vmul.f32 %v699, %v635
        %v716 = vmul.f32 %v700, %v636
        %v717 = vmul.f32 %v701, %v637
        %v718 = vmul.f32 %v702, %v638
        %v719 = vmul.f32 %v703, %v639
        %v720 = vmul.f32 %v704, %v640
        %v721 = vmul.f32 %v705, %v641
        %v722 = vmul.f32 %v706, %v642
        %v723 = vmul.f32 %v707, %v643
        %v724 = vmul.f32 %v708, %v644
        %v725 = vadd.f32 %v709, -0.28449672
        %v726 = vadd.f32 %v710, -0.28449672
        %v727 = vadd.f32 %v711, -0.28449672
        %v728 = vadd.f32 %v712, -0.28449672
        %v729 = vadd.f32 %v713, -0.28449672
        %v730 = vadd.f32 %v714, -0.28449672
        %v731 = vadd.f32 %v715, -0.28449672
        %v732 = vadd.f32 %v716, -0.28449672
        %v733 = vadd.f32 %v717, -0.28449672
        %v734 = vadd.f32 %v718, -0.28449672
        %v735 = vadd.f32 %v719, -0.28449672
        %v736 = vadd.f32 %v720, -0.28449672
        %v737 = vadd.f32 %v721, -0.28449672
        %v738 = vadd.f32 %v722, -0.28449672
        %v739 = vadd.f32 %v723, -0.28449672
        %v740 = vadd.f32 %v724, -0.28449672
        %v741 = vmul.f32 %v725, %v629
        %v742 = vmul.f32 %v726, %v630
        %v743 = vmul.f32 %v727, %v631
        %v744 = vmul.f32 %v728, %v632
        %v745 = vmul.f32 %v729, %v633
        %v746 = vmul.f32 %v730, %v634
        %v747 = vmul.f32 %v731, %v635
        %v748 = vmul.f32 %v732, %v636
        %v749 = vmul.f32 %v733, %v637
        %v750 = vmul.f32 %v734, %v638
        %v751 = vmul.f32 %v735, %v639
        %v752 = vmul.f32 %v736, %v640
        %v753 = vmul.f32 %v737, %v641
        %v754 = vmul.f32 %v738, %v642
        %v755 = vmul.f32 %v739, %v643
        %v756 = vmul.f32 %v740, %v644
        %v757 = vadd.f32 %v741, 0.2548296
        %v758 = vadd.f32 %v742, 0.2548296
        %v759 = vadd.f32 %v743, 0.2548296
        %v760 = vadd.f32 %v744, 0.2548296
        %v761 = vadd.f32 %v745, 0.2548296
        %v762 = vadd.f32 %v746, 0.2548296
        %v763 = vadd.f32 %v747, 0.2548296
        %v764 = vadd.f32 %v748, 0.2548296
        %v765 = vadd.f32 %v749, 0.2548296
        %v766 = vadd.f32 %v750, 0.2548296
        %v767 = vadd.f32 %v751, 0.2548296
        %v768 = vadd.f32 %v752, 0.2548296
        %v769 = vadd.f32 %v753, 0.2548296
        %v770 = vadd.f32 %v754, 0.2548296
        %v771 = vadd.f32 %v755, 0.2548296
        %v772 = vadd.f32 %v756, 0.2548296
        %v773 = vmul.f32 %v757, %v629
        %v774 = vmul.f32 %v758, %v630
        %v775 = vmul.f32 %v759, %v631
        %v776 = vmul.f32 %v760, %v632
        %v777 = vmul.f32 %v761, %v633
        %v778 = vmul.f32 %v762, %v634
        %v779 = vmul.f32 %v763, %v635
        %v780 = vmul.f32 %v764, %v636
        %v781 = vmul.f32 %v765, %v637
        %v782 = vmul.f32 %v766, %v638
        %v783 = vmul.f32 %v767, %v639
        %v784 = vmul.f32 %v768, %v640
        %v785 = vmul.f32 %v769, %v641
        %v786 = vmul.f32 %v770, %v642
        %v787 = vmul.f32 %v771, %v643
        %v788 = vmul.f32 %v772, %v644
        %v789 = vsub.f32 0.0, %v581
        %v790 = vsub.f32 0.0, %v582
        %v791 = vsub.f32 0.0, %v583
        %v792 = vsub.f32 0.0, %v584
        %v793 = vsub.f32 0.0, %v585
        %v794 = vsub.f32 0.0, %v586
        %v795 = vsub.f32 0.0, %v587
        %v796 = vsub.f32 0.0, %v588
        %v797 = vsub.f32 0.0, %v589
        %v798 = vsub.f32 0.0, %v590
        %v799 = vsub.f32 0.0, %v591
        %v800 = vsub.f32 0.0, %v592
        %v801 = vsub.f32 0.0, %v593
        %v802 = vsub.f32 0.0, %v594
        %v803 = vsub.f32 0.0, %v595
        %v804 = vsub.f32 0.0, %v596
        %v805 = vmul.f32 %v789, %v581
        %v806 = vmul.f32 %v790, %v582
        %v807 = vmul.f32 %v791, %v583
        %v808 = vmul.f32 %v792, %v584
        %v809 = vmul.f32 %v793, %v585
        %v810 = vmul.f32 %v794, %v586
        %v811 = vmul.f32 %v795, %v587
        %v812 = vmul.f32 %v796, %v588
        %v813 = vmul.f32 %v797, %v589
        %v814 = vmul.f32 %v798, %v590
        %v815 = vmul.f32 %v799, %v591
        %v816 = vmul.f32 %v800, %v592
        %v817 = vmul.f32 %v801, %v593
        %v818 = vmul.f32 %v802, %v594
        %v819 = vmul.f32 %v803, %v595
        %v820 = vmul.f32 %v804, %v596
        %v821 = vmul.f32 %v805, 1.442695
        %v822 = vpow.pop %v821
        %v823 = vmul.f32 %v806, 1.442695
        %v824 = vpow.pop %v823
        %v825 = vmul.f32 %v807, 1.442695
        %v826 = vpow.pop %v825
        %v827 = vmul.f32 %v808, 1.442695
        %v828 = vpow.pop %v827
        %v829 = vmul.f32 %v809, 1.442695
        %v830 = vpow.pop %v829
        %v831 = vmul.f32 %v810, 1.442695
        %v832 = vpow.pop %v831
        %v833 = vmul.f32 %v811, 1.442695
        %v834 = vpow.pop %v833
        %v835 = vmul.f32 %v812, 1.442695
        %v836 = vpow.pop %v835
        %v837 = vmul.f32 %v813, 1.442695
        %v838 = vpow.pop %v837
        %v839 = vmul.f32 %v814, 1.442695
        %v840 = vpow.pop %v839
        %v841 = vmul.f32 %v815, 1.442695
        %v842 = vpow.pop %v841
        %v843 = vmul.f32 %v816, 1.442695
        %v844 = vpow.pop %v843
        %v845 = vmul.f32 %v817, 1.442695
        %v846 = vpow.pop %v845
        %v847 = vmul.f32 %v818, 1.442695
        %v848 = vpow.pop %v847
        %v849 = vmul.f32 %v819, 1.442695
        %v850 = vpow.pop %v849
        %v851 = vmul.f32 %v820, 1.442695
        %v852 = vpow.pop %v851
        %v853 = vmul.f32 %v773, %v822
        %v854 = vmul.f32 %v774, %v824
        %v855 = vmul.f32 %v775, %v826
        %v856 = vmul.f32 %v776, %v828
        %v857 = vmul.f32 %v777, %v830
        %v858 = vmul.f32 %v778, %v832
        %v859 = vmul.f32 %v779, %v834
        %v860 = vmul.f32 %v780, %v836
        %v861 = vmul.f32 %v781, %v838
        %v862 = vmul.f32 %v782, %v840
        %v863 = vmul.f32 %v783, %v842
        %v864 = vmul.f32 %v784, %v844
        %v865 = vmul.f32 %v785, %v846
        %v866 = vmul.f32 %v786, %v848
        %v867 = vmul.f32 %v787, %v850
        %v868 = vmul.f32 %v788, %v852
        %v869 = vsub.f32 1.0, %v853
        %v870 = vsub.f32 1.0, %v854
        %v871 = vsub.f32 1.0, %v855
        %v872 = vsub.f32 1.0, %v856
        %v873 = vsub.f32 1.0, %v857
        %v874 = vsub.f32 1.0, %v858
        %v875 = vsub.f32 1.0, %v859
        %v876 = vsub.f32 1.0, %v860
        %v877 = vsub.f32 1.0, %v861
        %v878 = vsub.f32 1.0, %v862
        %v879 = vsub.f32 1.0, %v863
        %v880 = vsub.f32 1.0, %v864
        %v881 = vsub.f32 1.0, %v865
        %v882 = vsub.f32 1.0, %v866
        %v883 = vsub.f32 1.0, %v867
        %v884 = vsub.f32 1.0, %v868
        %v885 = vmul.f32 %v565, %v869
        %v886 = vmul.f32 %v566, %v870
        %v887 = vmul.f32 %v567, %v871
        %v888 = vmul.f32 %v568, %v872
        %v889 = vmul.f32 %v569, %v873
        %v890 = vmul.f32 %v570, %v874
        %v891 = vmul.f32 %v571, %v875
        %v892 = vmul.f32 %v572, %v876
        %v893 = vmul.f32 %v573, %v877
        %v894 = vmul.f32 %v574, %v878
        %v895 = vmul.f32 %v575, %v879
        %v896 = vmul.f32 %v576, %v880
        %v897 = vmul.f32 %v577, %v881
        %v898 = vmul.f32 %v578, %v882
        %v899 = vmul.f32 %v579, %v883
        %v900 = vmul.f32 %v580, %v884
        %v901 = vadd.f32 %v885, 1.0
        %v902 = vadd.f32 %v886, 1.0
        %v903 = vadd.f32 %v887, 1.0
        %v904 = vadd.f32 %v888, 1.0
        %v905 = vadd.f32 %v889, 1.0
        %v906 = vadd.f32 %v890, 1.0
        %v907 = vadd.f32 %v891, 1.0
        %v908 = vadd.f32 %v892, 1.0
        %v909 = vadd.f32 %v893, 1.0
        %v910 = vadd.f32 %v894, 1.0
        %v911 = vadd.f32 %v895, 1.0
        %v912 = vadd.f32 %v896, 1.0
        %v913 = vadd.f32 %v897, 1.0
        %v914 = vadd.f32 %v898, 1.0
        %v915 = vadd.f32 %v899, 1.0
        %v916 = vadd.f32 %v900, 1.0
        %v917 = vmul.f32 %v517, %v901
        %v918 = vmul.f32 %v518, %v902
        %v919 = vmul.f32 %v519, %v903
        %v920 = vmul.f32 %v520, %v904
        %v921 = vmul.f32 %v521, %v905
        %v922 = vmul.f32 %v522, %v906
        %v923 = vmul.f32 %v523, %v907
        %v924 = vmul.f32 %v524, %v908
        %v925 = vmul.f32 %v525, %v909
        %v926 = vmul.f32 %v526, %v910
        %v927 = vmul.f32 %v527, %v911
        %v928 = vmul.f32 %v528, %v912
        %v929 = vmul.f32 %v529, %v913
        %v930 = vmul.f32 %v530, %v914
        %v931 = vmul.f32 %v531, %v915
        %v932 = vmul.f32 %v532, %v916
        %v933 = vpack.c.bf16 %v918, %v917
        %v934 = vpack.c.bf16 %v920, %v919
        %v935 = vpack.c.bf16 %v922, %v921
        %v936 = vpack.c.bf16 %v924, %v923
        %v937 = vpack.c.bf16 %v926, %v925
        %v938 = vpack.c.bf16 %v928, %v927
        %v939 = vpack.c.bf16 %v930, %v929
        %v940 = vpack.c.bf16 %v932, %v931
        %v941 = vld [vmem:[%s2] sm:$0xff]
        %v942 = vld [vmem:[%s2 + $0x8] sm:$0xff]
        %v943 = vld [vmem:[%s2 + $0x10] sm:$0xff]
        %v944 = vld [vmem:[%s2 + $0x18] sm:$0xff]
        %v945 = vld [vmem:[%s2 + $0x20] sm:$0xff]
        %v946 = vld [vmem:[%s2 + $0x28] sm:$0xff]
        %v947 = vld [vmem:[%s2 + $0x30] sm:$0xff]
        %v948 = vld [vmem:[%s2 + $0x38] sm:$0xff]
        %v957 = vunpack.c.l.b16 %v941
        %v958 = vunpack.c.h.b16 %v941
        %v959 = vunpack.c.l.b16 %v942
        %v960 = vunpack.c.h.b16 %v942
        %v961 = vunpack.c.l.b16 %v943
        %v962 = vunpack.c.h.b16 %v943
        %v963 = vunpack.c.l.b16 %v944
        %v964 = vunpack.c.h.b16 %v944
        %v965 = vunpack.c.l.b16 %v945
        %v966 = vunpack.c.h.b16 %v945
        %v967 = vunpack.c.l.b16 %v946
        %v968 = vunpack.c.h.b16 %v946
        %v969 = vunpack.c.l.b16 %v947
        %v970 = vunpack.c.h.b16 %v947
        %v971 = vunpack.c.l.b16 %v948
        %v972 = vunpack.c.h.b16 %v948
        %v973 = vpack.c.b16 %v959, %v957
        %v974 = vpack.c.b16 %v960, %v958
        %v975 = vpack.c.b16 %v963, %v961
        %v976 = vpack.c.b16 %v964, %v962
        %v977 = vpack.c.b16 %v967, %v965
        %v978 = vpack.c.b16 %v968, %v966
        %v979 = vpack.c.b16 %v971, %v969
        %v980 = vpack.c.b16 %v972, %v970
        %vm989 = vcmask 523264
        %v991 = vsel %vm989, %v933, 0
        %v994 = vsel %vm989, %v934, 0
        %v997 = vsel %vm989, %v935, 0
        %v1000 = vsel %vm989, %v936, 0
        %v1003 = vsel %vm989, %v937, 0
        %v1006 = vsel %vm989, %v938, 0
        %v1009 = vsel %vm989, %v939, 0
        %v1012 = vsel %vm989, %v940, 0
        %1014 = vmatpush.bf16.msra.mxu0 0
        %1015 = vmatpush.bf16.msra.mxu0 0
        %1016 = vmatpush.bf16.msra.mxu0 0
        %1017 = vmatpush.bf16.msra.mxu0 0
        %1018 = vmatpush.bf16.msra.mxu0 %v979
        %1019 = vmatpush.bf16.msra.mxu0 %v977
        %1020 = vmatpush.bf16.msra.mxu0 %v975
        %1021 = vmatpush.bf16.msra.mxu0 %v973
        %1022 = vmatmul.bf16.gmra.mxu0 %v991
        %v1023 = vpop.f32.mrf.mxu0
        %v1024 = vadd.f32 0.0, %v1023
        %v1025 = vpop.f32.mrf.mxu0
        %v1026 = vadd.f32 0.0, %v1025
        %1027 = vmatmul.bf16.gmra.mxu0 %v994
        %v1028 = vpop.f32.mrf.mxu0
        %v1029 = vadd.f32 0.0, %v1028
        %v1030 = vpop.f32.mrf.mxu0
        %v1031 = vadd.f32 0.0, %v1030
        %1032 = vmatmul.bf16.gmra.mxu0 %v997
        %v1033 = vpop.f32.mrf.mxu0
        %v1034 = vadd.f32 0.0, %v1033
        %v1035 = vpop.f32.mrf.mxu0
        %v1036 = vadd.f32 0.0, %v1035
        %1037 = vmatmul.bf16.gmra.mxu0 %v1000
        %v1038 = vpop.f32.mrf.mxu0
        %v1039 = vadd.f32 0.0, %v1038
        %v1040 = vpop.f32.mrf.mxu0
        %v1041 = vadd.f32 0.0, %v1040
        %1042 = vmatmul.bf16.gmra.mxu0 %v1003
        %v1043 = vpop.f32.mrf.mxu0
        %v1044 = vadd.f32 0.0, %v1043
        %v1045 = vpop.f32.mrf.mxu0
        %v1046 = vadd.f32 0.0, %v1045
        %1047 = vmatmul.bf16.gmra.mxu0 %v1006
        %v1048 = vpop.f32.mrf.mxu0
        %v1049 = vadd.f32 0.0, %v1048
        %v1050 = vpop.f32.mrf.mxu0
        %v1051 = vadd.f32 0.0, %v1050
        %1052 = vmatmul.bf16.gmra.mxu0 %v1009
        %v1053 = vpop.f32.mrf.mxu0
        %v1054 = vadd.f32 0.0, %v1053
        %v1055 = vpop.f32.mrf.mxu0
        %v1056 = vadd.f32 0.0, %v1055
        %1057 = vmatmul.bf16.gmra.mxu0 %v1012
        %v1058 = vpop.f32.mrf.mxu0
        %v1059 = vadd.f32 0.0, %v1058
        %v1060 = vpop.f32.mrf.mxu0
        %v1061 = vadd.f32 0.0, %v1060
        %1062 = vdwg.mxu0
        %1063 = vmatpush.bf16.msra.mxu0 0
        %1064 = vmatpush.bf16.msra.mxu0 0
        %1065 = vmatpush.bf16.msra.mxu0 0
        %1066 = vmatpush.bf16.msra.mxu0 0
        %1067 = vmatpush.bf16.msra.mxu0 %v980
        %1068 = vmatpush.bf16.msra.mxu0 %v978
        %1069 = vmatpush.bf16.msra.mxu0 %v976
        %1070 = vmatpush.bf16.msra.mxu0 %v974
        %1071 = vmatmul.bf16.gmra.mxu0 %v991
        %v1072 = vpop.f32.mrf.mxu0
        %v1073 = vadd.f32 0.0, %v1072
        %v1074 = vpop.f32.mrf.mxu0
        %v1075 = vadd.f32 0.0, %v1074
        %1076 = vmatmul.bf16.gmra.mxu0 %v994
        %v1077 = vpop.f32.mrf.mxu0
        %v1078 = vadd.f32 0.0, %v1077
        %v1079 = vpop.f32.mrf.mxu0
        %v1080 = vadd.f32 0.0, %v1079
        %1081 = vmatmul.bf16.gmra.mxu0 %v997
        %v1082 = vpop.f32.mrf.mxu0
        %v1083 = vadd.f32 0.0, %v1082
        %v1084 = vpop.f32.mrf.mxu0
        %v1085 = vadd.f32 0.0, %v1084
        %1086 = vmatmul.bf16.gmra.mxu0 %v1000
        %v1087 = vpop.f32.mrf.mxu0
        %v1088 = vadd.f32 0.0, %v1087
        %v1089 = vpop.f32.mrf.mxu0
        %v1090 = vadd.f32 0.0, %v1089
        %1091 = vmatmul.bf16.gmra.mxu0 %v1003
        %v1092 = vpop.f32.mrf.mxu0
        %v1093 = vadd.f32 0.0, %v1092
        %v1094 = vpop.f32.mrf.mxu0
        %v1095 = vadd.f32 0.0, %v1094
        %1096 = vmatmul.bf16.gmra.mxu0 %v1006
        %v1097 = vpop.f32.mrf.mxu0
        %v1098 = vadd.f32 0.0, %v1097
        %v1099 = vpop.f32.mrf.mxu0
        %v1100 = vadd.f32 0.0, %v1099
        %1101 = vmatmul.bf16.gmra.mxu0 %v1009
        %v1102 = vpop.f32.mrf.mxu0
        %v1103 = vadd.f32 0.0, %v1102
        %v1104 = vpop.f32.mrf.mxu0
        %v1105 = vadd.f32 0.0, %v1104
        %1106 = vmatmul.bf16.gmra.mxu0 %v1012
        %v1107 = vpop.f32.mrf.mxu0
        %v1108 = vadd.f32 0.0, %v1107
        %v1109 = vpop.f32.mrf.mxu0
        %v1110 = vadd.f32 0.0, %v1109
        %1111 = vdwg.mxu0
        %v1112 = vmul.f32 %v1024, 0.5
        %v1113 = vmul.f32 %v1073, 0.5
        %v1114 = vmul.f32 %v1026, 0.5
        %v1115 = vmul.f32 %v1075, 0.5
        %v1116 = vmul.f32 %v1029, 0.5
        %v1117 = vmul.f32 %v1078, 0.5
        %v1118 = vmul.f32 %v1031, 0.5
        %v1119 = vmul.f32 %v1080, 0.5
        %v1120 = vmul.f32 %v1034, 0.5
        %v1121 = vmul.f32 %v1083, 0.5
        %v1122 = vmul.f32 %v1036, 0.5
        %v1123 = vmul.f32 %v1085, 0.5
        %v1124 = vmul.f32 %v1039, 0.5
        %v1125 = vmul.f32 %v1088, 0.5
        %v1126 = vmul.f32 %v1041, 0.5
        %v1127 = vmul.f32 %v1090, 0.5
        %v1128 = vmul.f32 %v1044, 0.5
        %v1129 = vmul.f32 %v1093, 0.5
        %v1130 = vmul.f32 %v1046, 0.5
        %v1131 = vmul.f32 %v1095, 0.5
        %v1132 = vmul.f32 %v1049, 0.5
        %v1133 = vmul.f32 %v1098, 0.5
        %v1134 = vmul.f32 %v1051, 0.5
        %v1135 = vmul.f32 %v1100, 0.5
        %v1136 = vmul.f32 %v1054, 0.5
        %v1137 = vmul.f32 %v1103, 0.5
        %v1138 = vmul.f32 %v1056, 0.5
        %v1139 = vmul.f32 %v1105, 0.5
        %v1140 = vmul.f32 %v1059, 0.5
        %v1141 = vmul.f32 %v1108, 0.5
        %v1142 = vmul.f32 %v1061, 0.5
        %v1143 = vmul.f32 %v1110, 0.5
        %v1144 = vpack.c.bf16 %v1113, %v1112
        %v1145 = vpack.c.bf16 %v1115, %v1114
        %v1146 = vpack.c.bf16 %v1117, %v1116
        %v1147 = vpack.c.bf16 %v1119, %v1118
        %v1148 = vpack.c.bf16 %v1121, %v1120
        %v1149 = vpack.c.bf16 %v1123, %v1122
        %v1150 = vpack.c.bf16 %v1125, %v1124
        %v1151 = vpack.c.bf16 %v1127, %v1126
        %v1152 = vpack.c.bf16 %v1129, %v1128
        %v1153 = vpack.c.bf16 %v1131, %v1130
        %v1154 = vpack.c.bf16 %v1133, %v1132
        %v1155 = vpack.c.bf16 %v1135, %v1134
        %v1156 = vpack.c.bf16 %v1137, %v1136
        %v1157 = vpack.c.bf16 %v1139, %v1138
        %v1158 = vpack.c.bf16 %v1141, %v1140
        %v1159 = vpack.c.bf16 %v1143, %v1142
        %1160 = vst [vmem:[%s191] sm:$0xff] %v1144
        %1161 = vst [vmem:[%s191 + $0x8] sm:$0xff] %v1145
        %1162 = vst [vmem:[%s191 + $0x10] sm:$0xff] %v1146
        %1163 = vst [vmem:[%s191 + $0x18] sm:$0xff] %v1147
        %1164 = vst [vmem:[%s191 + $0x20] sm:$0xff] %v1148
        %1165 = vst [vmem:[%s191 + $0x28] sm:$0xff] %v1149
        %1166 = vst [vmem:[%s191 + $0x30] sm:$0xff] %v1150
        %1167 = vst [vmem:[%s191 + $0x38] sm:$0xff] %v1151
        %1168 = vst [vmem:[%s191 + $0x40] sm:$0xff] %v1152
        %1169 = vst [vmem:[%s191 + $0x48] sm:$0xff] %v1153
        %1170 = vst [vmem:[%s191 + $0x50] sm:$0xff] %v1154
        %1171 = vst [vmem:[%s191 + $0x58] sm:$0xff] %v1155
        %1172 = vst [vmem:[%s191 + $0x60] sm:$0xff] %v1156
        %1173 = vst [vmem:[%s191 + $0x68] sm:$0xff] %v1157
        %1174 = vst [vmem:[%s191 + $0x70] sm:$0xff] %v1158
        %1175 = vst [vmem:[%s191 + $0x78] sm:$0xff] %v1159
        %s1176 = sand.u32 %s96, 1
        %s1177 = scalar_lea.sflag [#allocation4], %s1176
        %s1178 = sand.u32 %s96, 1
        %s1179 = smul.addr %s1178, 128
        %s1180 = scalar_lea.vmem [#allocation5], %s1179
        // Predicated region
        $region37: #{tpu_custom_call.1} parent=31 // pred_check
          %p1181 = pneg %p106
        $region38: #{tpu_custom_call.1} parent=31 // pred_check_branch
          %1183 = sbr.rel (%p1181) target = $region40
        $region39: #{tpu_custom_call.1} parent=31 // pred_region
          %s1184 = smul.u32 16, %s20
          %1186 = vsyncadd %s1177, 0
          %s1187 = smul.addr %s1184, 2
          %s1188 = smul.addr %s1187, 4
          %s1189 = scalar_lea.hbm %s3, %s1188
          %s1190 = sshll.u32 %s1180, 4
          %s1191 = int_to_ptr.vmem [resolvable:$true] %s1190
          %s1192 = sshll.u32 %s1189, 4
          %s1193 = int_to_ptr.hbm [resolvable:$true] %s1192
          %1198 = dma.vmem_to_hbm [thread:$0]  %s1191, 2048, %s1193, %s1177, 128, 128, 8
        $region40: #{tpu_custom_call.1} parent=31 // pred_fallthru
          _
      $region32: #{tpu_custom_call.1} parent=5 // pred_fallthru
        _
      %p1199 = scmp.le.s32.totalorder 2, %s15
      // Predicated region
      $region41: #{tpu_custom_call.1} parent=5 // pred_check
        %p1200 = pneg %p1199
      $region42: #{tpu_custom_call.1} parent=5 // pred_check_branch
        %1202 = sbr.rel (%p1200) target = $region44
      $region43: #{tpu_custom_call.1} parent=5 // pred_region
        %s1203 = ssub.s32 %s15, 2
        // Predicated region
        $region45: #{tpu_custom_call.1} parent=43 // pred_check
          %p1204 = pneg %p112
        $region46: #{tpu_custom_call.1} parent=43 // pred_check_branch
          %1206 = sbr.rel (%p1204) target = $region48
        $region47: #{tpu_custom_call.1} parent=43 // pred_region
          %s1207 = sand.u32 %s97, 1
          %s1208 = scalar_lea.sflag [#allocation4], %s1207
          %s1209 = sand.u32 %s97, 1
          %s1210 = smul.addr %s1209, 128
          %s1211 = scalar_lea.vmem [#allocation5], %s1210
          %1213 = dma.done %s1208, 2048
        $region48: #{tpu_custom_call.1} parent=43 // pred_fallthru
          _
      $region44: #{tpu_custom_call.1} parent=5 // pred_fallthru
        _
    $region6: #{tpu_custom_call.1} parent=1 // loop_footer
      %s19 = sadd.s32 1, %s15
    $region7: #{tpu_custom_call.1} parent=1 // loop_footer_branch
      %14 = sbr.rel target = $region3
    $region8: #{tpu_custom_call.1} parent=1 // loop_exit
      _
    %1214 = vsyncpa [#allocation3], 1
    %s1215 = scalar_lea.sflag [#allocation3], 1
    %1216 = vsyncpa %s1215, 1
    %1217 = vsyncpa [#allocation4], 1
    %s1218 = scalar_lea.sflag [#allocation4], 1
    %1219 = vsyncpa %s1218, 1

</llo_original>
